<compile_context>
chip_gen: v6e
topology: v6e:2x2x1
jax: 0.10.0
libtpu: 0.0.40
codegen_flags: <defaults>
</compile_context>

<pallas_src>
import jax
import jax.numpy as jnp
from jax import lax
from jax.experimental import pallas as pl
from jax.experimental.pallas import tpu as pltpu


def _dwconv_bn_relu_kernel(x_ref, w_ref, bias_ref, o_ref, xpad_ref):
    # x_ref:    (1, H, W, tC)   unpadded input block (one image, one C-tile)
    # w_ref:    (3, 3, tC)      depthwise weights with BN scale already folded
    # bias_ref: (1, tC)         folded BN bias = beta - mean * gamma/sqrt(var+eps)
    # o_ref:    (1, H, W, tC)
    # xpad_ref: (H+2, W+2, tC)  VMEM scratch holding the zero-padded tile
    H = o_ref.shape[1]
    W = o_ref.shape[2]
    C = o_ref.shape[3]

    # Build the padded tile in VMEM: zero the 1-pixel halo, copy the interior.
    # (Halo zeroing is repeated every grid step -- cheap, and safe under
    #  megacore "parallel" scheduling where each core has its own scratch.)
    zrow = jnp.zeros((1, W + 2, C), xpad_ref.dtype)
    zcol = jnp.zeros((H + 2, 1, C), xpad_ref.dtype)
    xpad_ref[0:1, :, :] = zrow
    xpad_ref[H + 1:H + 2, :, :] = zrow
    xpad_ref[:, 0:1, :] = zcol
    xpad_ref[:, W + 1:W + 2, :] = zcol
    xpad_ref[1:H + 1, 1:W + 1, :] = x_ref[0]

    # 3x3 depthwise conv = 9 shifted elementwise multiply-adds (pure VPU work,
    # channels stay on the lane axis; f32 accumulation sized to the tile).
    # TODO(synk): if profiling shows the kw=1,2 (sublane-offset) slices
    # materializing shifted VMEM copies, move the W-shift to pltpu.roll (XLU).
    acc = jnp.zeros((H, W, C), jnp.float32)
    for kh in range(3):
        for kw in range(3):
            acc = acc + (
                xpad_ref[kh:kh + H, kw:kw + W, :].astype(jnp.float32)
                * w_ref[kh, kw, :]
            )

    y = acc + bias_ref[0, :]
    o_ref[0] = jnp.maximum(y, 0.0).astype(o_ref.dtype)


def _pick_channel_tile(c):
    """Largest lane-dense divisor of c (multiple of 128) if one exists."""
    for cand in (512, 256, 128):
        if c % cand == 0:
            return cand
    return c


def dwconv_bn_relu(x_nchw, weight_oihw, gamma, beta, running_mean, running_var,
                   eps=1e-5):
    """Forward pass of _DWConv (stride=1).  Input NCHW, output NCHW."""
    # TODO(synk): general `stride` not implemented (module default stride=1).
    N, Cin, H, W = x_nchw.shape
    Cout = weight_oihw.shape[0]
    mult = Cout // Cin  # depthwise channel multiplier (groups = Cin)

    # ---- glue (plain JAX): layout + BN folding (no pad pass anymore) ----
    x = jnp.transpose(x_nchw, (0, 2, 3, 1))                 # NCHW -> NHWC
    if mult > 1:
        # grouped-conv mapping: output channel o reads input channel o // mult
        # TODO(synk): mult>1 still pays one HBM repeat pass; the common
        # depthwise case (mult == 1) takes the zero-extra-pass path.
        x = jnp.repeat(x, mult, axis=-1)

    # TODO(synk): BatchNorm reproduced in inference mode (running stats folded
    # into scale/bias); PyTorch training-mode batch statistics not computed.
    scale = gamma / jnp.sqrt(running_var + eps)              # (Cout,)
    bias = (beta - running_mean * scale).reshape(1, Cout).astype(jnp.float32)

    # Fold BN scale into the weights -> kernel only needs bias-add + ReLU.
    w = jnp.transpose(weight_oihw[:, 0, :, :], (1, 2, 0))    # (Cout,1,3,3)->(3,3,Cout)
    w = (w * scale[None, None, :]).astype(jnp.float32)

    tC = _pick_channel_tile(Cout)

    # ---- Pallas kernel: one (image, channel-tile) per grid step ----
    out_nhwc = pl.pallas_call(
        _dwconv_bn_relu_kernel,
        out_shape=jax.ShapeDtypeStruct((N, H, W, Cout), x_nchw.dtype),
        grid_spec=pltpu.PrefetchScalarGridSpec(
            num_scalar_prefetch=0,
            grid=(N, Cout // tC),
            in_specs=[
                pl.BlockSpec((1, H, W, tC), lambda n, c: (n, 0, 0, c)),
                pl.BlockSpec((3, 3, tC), lambda n, c: (0, 0, c)),
                pl.BlockSpec((1, tC), lambda n, c: (0, c)),
            ],
            out_specs=pl.BlockSpec((1, H, W, tC), lambda n, c: (n, 0, 0, c)),
            scratch_shapes=[pltpu.VMEM((H + 2, W + 2, tC), x.dtype)],
        ),
        compiler_params=pltpu.CompilerParams(
            dimension_semantics=("parallel", "parallel"),
            vmem_limit_bytes=64 * 1024 * 1024,
        ),
    )(x, w, bias)

    return jnp.transpose(out_nhwc, (0, 3, 1, 2))             # NHWC -> NCHW


def _reference(x_nchw, weight_oihw, gamma, beta, mean, var, eps=1e-5):
    """Pure-JAX reference (lax conv) for correctness check."""
    Cin = x_nchw.shape[1]
    y = lax.conv_general_dilated(
        x_nchw, weight_oihw, window_strides=(1, 1),
        padding=((1, 1), (1, 1)),
        dimension_numbers=("NCHW", "OIHW", "NCHW"),
        feature_group_count=Cin)
    inv = 1.0 / jnp.sqrt(var + eps)
    y = (y - mean[None, :, None, None]) * inv[None, :, None, None]
    y = y * gamma[None, :, None, None] + beta[None, :, None, None]
    return jnp.maximum(y, 0.0)


if __name__ == "__main__":
    # small shapes consistent with the module: batch=2, channels=4, spatial=16
    N, C, H, W = 2, 4, 16, 16
    dw_channels = C
    out_channels = C          # depthwise multiplier 1 (Conv2d groups=dw_channels)

    key = jax.random.PRNGKey(0)
    kx, kw, kg, kb, km, kv = jax.random.split(key, 6)

    x = jax.random.normal(kx, (N, C, H, W), dtype=jnp.float32)
    # Conv2d(dw, out, 3, groups=dw, bias=False).weight : (out_channels, 1, 3, 3)
    weight = jax.random.normal(kw, (out_channels, 1, 3, 3), dtype=jnp.float32) * 0.1
    # BatchNorm2d(out_channels) parameters / running stats (deterministic)
    gamma = 1.0 + 0.1 * jax.random.normal(kg, (out_channels,), dtype=jnp.float32)
    beta = 0.1 * jax.random.normal(kb, (out_channels,), dtype=jnp.float32)
    running_mean = 0.1 * jax.random.normal(km, (out_channels,), dtype=jnp.float32)
    running_var = jnp.abs(jax.random.normal(kv, (out_channels,), dtype=jnp.float32)) + 0.5

    out = dwconv_bn_relu(x, weight, gamma, beta, running_mean, running_var)
    out = jax.block_until_ready(out)

    ref = _reference(x, weight, gamma, beta, running_mean, running_var)
    assert out.shape == (N, out_channels, H, W)
    assert jnp.allclose(out, ref, atol=1e-4, rtol=1e-4), "mismatch vs reference"

    print("KERNEL_OK")
</pallas_src>

<mosaic_0001>
module attributes {stable_mosaic.version = 11 : i64} {
  func.func @_dwconv_bn_relu_kernel(%arg0: i32, %arg1: i32, %arg2: memref<1x16x16x4xf32, #tpu.memory_space<vmem>>, %arg3: memref<3x3x4xf32, #tpu.memory_space<vmem>>, %arg4: memref<1x4xf32, #tpu.memory_space<vmem>>, %arg5: memref<1x16x16x4xf32, #tpu.memory_space<vmem>>, %arg6: memref<18x18x4xf32, #tpu.memory_space<vmem>>) attributes {dimension_semantics = [#tpu.dimension_semantics<parallel>, #tpu.dimension_semantics<parallel>], iteration_bounds = array<i64: 2, 1>, scalar_prefetch = 0 : i64, scratch_operands = 1 : i64, tpu.core_type = #tpu.core_type<tc>, window_params = [{transform_indices = @transform_0, window_bounds = array<i64: 1, 16, 16, 4>}, {transform_indices = @transform_1, window_bounds = array<i64: 3, 3, 4>}, {transform_indices = @transform_2, window_bounds = array<i64: 1, 4>}, {transform_indices = @transform_3, window_bounds = array<i64: 1, 16, 16, 4>}]} {
    %cst = arith.constant 0.000000e+00 : f32
    %0 = vector.broadcast %cst : f32 to vector<1x18x4xf32>
    %cst_0 = arith.constant 0.000000e+00 : f32
    %1 = vector.broadcast %cst_0 : f32 to vector<18x1x4xf32>
    %c0 = arith.constant 0 : index
    %c0_1 = arith.constant 0 : index
    %c0_2 = arith.constant 0 : index
    %2 = vector.load %arg6[%c0, %c0_1, %c0_2] : memref<18x18x4xf32, #tpu.memory_space<vmem>>, vector<1x18x4xf32>
    tpu.vector_store %arg6[%c0, %c0_1, %c0_2], %0 {strides = array<i32>} : memref<18x18x4xf32, #tpu.memory_space<vmem>>, vector<1x18x4xf32>,
    %c17 = arith.constant 17 : index
    %c0_3 = arith.constant 0 : index
    %c0_4 = arith.constant 0 : index
    %3 = vector.load %arg6[%c17, %c0_3, %c0_4] : memref<18x18x4xf32, #tpu.memory_space<vmem>>, vector<1x18x4xf32>
    tpu.vector_store %arg6[%c17, %c0_3, %c0_4], %0 {strides = array<i32>} : memref<18x18x4xf32, #tpu.memory_space<vmem>>, vector<1x18x4xf32>,
    %c0_5 = arith.constant 0 : index
    %c0_6 = arith.constant 0 : index
    %c0_7 = arith.constant 0 : index
    %4 = vector.load %arg6[%c0_5, %c0_6, %c0_7] : memref<18x18x4xf32, #tpu.memory_space<vmem>>, vector<18x1x4xf32>
    tpu.vector_store %arg6[%c0_5, %c0_6, %c0_7], %1 {strides = array<i32>} : memref<18x18x4xf32, #tpu.memory_space<vmem>>, vector<18x1x4xf32>,
    %c0_8 = arith.constant 0 : index
    %c17_9 = arith.constant 17 : index
    %c0_10 = arith.constant 0 : index
    %5 = vector.load %arg6[%c0_8, %c17_9, %c0_10] : memref<18x18x4xf32, #tpu.memory_space<vmem>>, vector<18x1x4xf32>
    tpu.vector_store %arg6[%c0_8, %c17_9, %c0_10], %1 {strides = array<i32>} : memref<18x18x4xf32, #tpu.memory_space<vmem>>, vector<18x1x4xf32>,
    %c0_11 = arith.constant 0 : index
    %c0_12 = arith.constant 0 : index
    %c0_13 = arith.constant 0 : index
    %c0_14 = arith.constant 0 : index
    %6 = vector.load %arg2[%c0_11, %c0_12, %c0_13, %c0_14] : memref<1x16x16x4xf32, #tpu.memory_space<vmem>>, vector<1x16x16x4xf32>
    %7 = vector.shape_cast %6 : vector<1x16x16x4xf32> to vector<16x16x4xf32>
    %c1 = arith.constant 1 : index
    %c1_15 = arith.constant 1 : index
    %c0_16 = arith.constant 0 : index
    %8 = vector.load %arg6[%c1, %c1_15, %c0_16] : memref<18x18x4xf32, #tpu.memory_space<vmem>>, vector<16x16x4xf32>
    tpu.vector_store %arg6[%c1, %c1_15, %c0_16], %7 {strides = array<i32>} : memref<18x18x4xf32, #tpu.memory_space<vmem>>, vector<16x16x4xf32>,
    %cst_17 = arith.constant 0.000000e+00 : f32
    %9 = vector.broadcast %cst_17 : f32 to vector<16x16x4xf32>
    %c0_18 = arith.constant 0 : index
    %c0_19 = arith.constant 0 : index
    %c0_20 = arith.constant 0 : index
    %10 = vector.load %arg6[%c0_18, %c0_19, %c0_20] : memref<18x18x4xf32, #tpu.memory_space<vmem>>, vector<16x16x4xf32>
    %c0_21 = arith.constant 0 : index
    %c0_22 = arith.constant 0 : index
    %c0_23 = arith.constant 0 : index
    %11 = vector.load %arg3[%c0_21, %c0_22, %c0_23] : memref<3x3x4xf32, #tpu.memory_space<vmem>>, vector<1x1x4xf32>
    %12 = vector.shape_cast %11 : vector<1x1x4xf32> to vector<4xf32>
    %13 = vector.shape_cast %12 : vector<4xf32> to vector<1x1x4xf32>
    %14 = vector.broadcast %13 : vector<1x1x4xf32> to vector<16x16x4xf32>
    %15 = arith.mulf %10, %14 : vector<16x16x4xf32>
    %16 = arith.addf %9, %15 : vector<16x16x4xf32>
    %c0_24 = arith.constant 0 : index
    %c1_25 = arith.constant 1 : index
    %c0_26 = arith.constant 0 : index
    %17 = vector.load %arg6[%c0_24, %c1_25, %c0_26] : memref<18x18x4xf32, #tpu.memory_space<vmem>>, vector<16x16x4xf32>
    %c0_27 = arith.constant 0 : index
    %c1_28 = arith.constant 1 : index
    %c0_29 = arith.constant 0 : index
    %18 = vector.load %arg3[%c0_27, %c1_28, %c0_29] : memref<3x3x4xf32, #tpu.memory_space<vmem>>, vector<1x1x4xf32>
    %19 = vector.shape_cast %18 : vector<1x1x4xf32> to vector<4xf32>
    %20 = vector.shape_cast %19 : vector<4xf32> to vector<1x1x4xf32>
    %21 = vector.broadcast %20 : vector<1x1x4xf32> to vector<16x16x4xf32>
    %22 = arith.mulf %17, %21 : vector<16x16x4xf32>
    %23 = arith.addf %16, %22 : vector<16x16x4xf32>
    %c0_30 = arith.constant 0 : index
    %c2 = arith.constant 2 : index
    %c0_31 = arith.constant 0 : index
    %24 = vector.load %arg6[%c0_30, %c2, %c0_31] : memref<18x18x4xf32, #tpu.memory_space<vmem>>, vector<16x16x4xf32>
    %c0_32 = arith.constant 0 : index
    %c2_33 = arith.constant 2 : index
    %c0_34 = arith.constant 0 : index
    %25 = vector.load %arg3[%c0_32, %c2_33, %c0_34] : memref<3x3x4xf32, #tpu.memory_space<vmem>>, vector<1x1x4xf32>
    %26 = vector.shape_cast %25 : vector<1x1x4xf32> to vector<4xf32>
    %27 = vector.shape_cast %26 : vector<4xf32> to vector<1x1x4xf32>
    %28 = vector.broadcast %27 : vector<1x1x4xf32> to vector<16x16x4xf32>
    %29 = arith.mulf %24, %28 : vector<16x16x4xf32>
    %30 = arith.addf %23, %29 : vector<16x16x4xf32>
    %c1_35 = arith.constant 1 : index
    %c0_36 = arith.constant 0 : index
    %c0_37 = arith.constant 0 : index
    %31 = vector.load %arg6[%c1_35, %c0_36, %c0_37] : memref<18x18x4xf32, #tpu.memory_space<vmem>>, vector<16x16x4xf32>
    %c1_38 = arith.constant 1 : index
    %c0_39 = arith.constant 0 : index
    %c0_40 = arith.constant 0 : index
    %32 = vector.load %arg3[%c1_38, %c0_39, %c0_40] : memref<3x3x4xf32, #tpu.memory_space<vmem>>, vector<1x1x4xf32>
    %33 = vector.shape_cast %32 : vector<1x1x4xf32> to vector<4xf32>
    %34 = vector.shape_cast %33 : vector<4xf32> to vector<1x1x4xf32>
    %35 = vector.broadcast %34 : vector<1x1x4xf32> to vector<16x16x4xf32>
    %36 = arith.mulf %31, %35 : vector<16x16x4xf32>
    %37 = arith.addf %30, %36 : vector<16x16x4xf32>
    %c1_41 = arith.constant 1 : index
    %c1_42 = arith.constant 1 : index
    %c0_43 = arith.constant 0 : index
    %38 = vector.load %arg6[%c1_41, %c1_42, %c0_43] : memref<18x18x4xf32, #tpu.memory_space<vmem>>, vector<16x16x4xf32>
    %c1_44 = arith.constant 1 : index
    %c1_45 = arith.constant 1 : index
    %c0_46 = arith.constant 0 : index
    %39 = vector.load %arg3[%c1_44, %c1_45, %c0_46] : memref<3x3x4xf32, #tpu.memory_space<vmem>>, vector<1x1x4xf32>
    %40 = vector.shape_cast %39 : vector<1x1x4xf32> to vector<4xf32>
    %41 = vector.shape_cast %40 : vector<4xf32> to vector<1x1x4xf32>
    %42 = vector.broadcast %41 : vector<1x1x4xf32> to vector<16x16x4xf32>
    %43 = arith.mulf %38, %42 : vector<16x16x4xf32>
    %44 = arith.addf %37, %43 : vector<16x16x4xf32>
    %c1_47 = arith.constant 1 : index
    %c2_48 = arith.constant 2 : index
    %c0_49 = arith.constant 0 : index
    %45 = vector.load %arg6[%c1_47, %c2_48, %c0_49] : memref<18x18x4xf32, #tpu.memory_space<vmem>>, vector<16x16x4xf32>
    %c1_50 = arith.constant 1 : index
    %c2_51 = arith.constant 2 : index
    %c0_52 = arith.constant 0 : index
    %46 = vector.load %arg3[%c1_50, %c2_51, %c0_52] : memref<3x3x4xf32, #tpu.memory_space<vmem>>, vector<1x1x4xf32>
    %47 = vector.shape_cast %46 : vector<1x1x4xf32> to vector<4xf32>
    %48 = vector.shape_cast %47 : vector<4xf32> to vector<1x1x4xf32>
    %49 = vector.broadcast %48 : vector<1x1x4xf32> to vector<16x16x4xf32>
    %50 = arith.mulf %45, %49 : vector<16x16x4xf32>
    %51 = arith.addf %44, %50 : vector<16x16x4xf32>
    %c2_53 = arith.constant 2 : index
    %c0_54 = arith.constant 0 : index
    %c0_55 = arith.constant 0 : index
    %52 = vector.load %arg6[%c2_53, %c0_54, %c0_55] : memref<18x18x4xf32, #tpu.memory_space<vmem>>, vector<16x16x4xf32>
    %c2_56 = arith.constant 2 : index
    %c0_57 = arith.constant 0 : index
    %c0_58 = arith.constant 0 : index
    %53 = vector.load %arg3[%c2_56, %c0_57, %c0_58] : memref<3x3x4xf32, #tpu.memory_space<vmem>>, vector<1x1x4xf32>
    %54 = vector.shape_cast %53 : vector<1x1x4xf32> to vector<4xf32>
    %55 = vector.shape_cast %54 : vector<4xf32> to vector<1x1x4xf32>
    %56 = vector.broadcast %55 : vector<1x1x4xf32> to vector<16x16x4xf32>
    %57 = arith.mulf %52, %56 : vector<16x16x4xf32>
    %58 = arith.addf %51, %57 : vector<16x16x4xf32>
    %c2_59 = arith.constant 2 : index
    %c1_60 = arith.constant 1 : index
    %c0_61 = arith.constant 0 : index
    %59 = vector.load %arg6[%c2_59, %c1_60, %c0_61] : memref<18x18x4xf32, #tpu.memory_space<vmem>>, vector<16x16x4xf32>
    %c2_62 = arith.constant 2 : index
    %c1_63 = arith.constant 1 : index
    %c0_64 = arith.constant 0 : index
    %60 = vector.load %arg3[%c2_62, %c1_63, %c0_64] : memref<3x3x4xf32, #tpu.memory_space<vmem>>, vector<1x1x4xf32>
    %61 = vector.shape_cast %60 : vector<1x1x4xf32> to vector<4xf32>
    %62 = vector.shape_cast %61 : vector<4xf32> to vector<1x1x4xf32>
    %63 = vector.broadcast %62 : vector<1x1x4xf32> to vector<16x16x4xf32>
    %64 = arith.mulf %59, %63 : vector<16x16x4xf32>
    %65 = arith.addf %58, %64 : vector<16x16x4xf32>
    %c2_65 = arith.constant 2 : index
    %c2_66 = arith.constant 2 : index
    %c0_67 = arith.constant 0 : index
    %66 = vector.load %arg6[%c2_65, %c2_66, %c0_67] : memref<18x18x4xf32, #tpu.memory_space<vmem>>, vector<16x16x4xf32>
    %c2_68 = arith.constant 2 : index
    %c2_69 = arith.constant 2 : index
    %c0_70 = arith.constant 0 : index
    %67 = vector.load %arg3[%c2_68, %c2_69, %c0_70] : memref<3x3x4xf32, #tpu.memory_space<vmem>>, vector<1x1x4xf32>
    %68 = vector.shape_cast %67 : vector<1x1x4xf32> to vector<4xf32>
    %69 = vector.shape_cast %68 : vector<4xf32> to vector<1x1x4xf32>
    %70 = vector.broadcast %69 : vector<1x1x4xf32> to vector<16x16x4xf32>
    %71 = arith.mulf %66, %70 : vector<16x16x4xf32>
    %72 = arith.addf %65, %71 : vector<16x16x4xf32>
    %c0_71 = arith.constant 0 : index
    %c0_72 = arith.constant 0 : index
    %73 = vector.load %arg4[%c0_71, %c0_72] : memref<1x4xf32, #tpu.memory_space<vmem>>, vector<1x4xf32>
    %74 = vector.shape_cast %73 : vector<1x4xf32> to vector<4xf32>
    %75 = vector.shape_cast %74 : vector<4xf32> to vector<1x1x4xf32>
    %76 = vector.broadcast %75 : vector<1x1x4xf32> to vector<16x16x4xf32>
    %77 = arith.addf %72, %76 : vector<16x16x4xf32>
    %cst_73 = arith.constant 0.000000e+00 : f32
    %78 = vector.broadcast %cst_73 : f32 to vector<16x16x4xf32>
    %79 = arith.maximumf %77, %78 : vector<16x16x4xf32>
    %c0_74 = arith.constant 0 : index
    %c0_75 = arith.constant 0 : index
    %c0_76 = arith.constant 0 : index
    %c0_77 = arith.constant 0 : index
    %80 = vector.load %arg5[%c0_74, %c0_75, %c0_76, %c0_77] : memref<1x16x16x4xf32, #tpu.memory_space<vmem>>, vector<1x16x16x4xf32>
    %81 = vector.shape_cast %80 : vector<1x16x16x4xf32> to vector<16x16x4xf32>
    %82 = vector.shape_cast %79 : vector<16x16x4xf32> to vector<1x16x16x4xf32>
    tpu.vector_store %arg5[%c0_74, %c0_75, %c0_76, %c0_77], %82 {strides = array<i32>} : memref<1x16x16x4xf32, #tpu.memory_space<vmem>>, vector<1x16x16x4xf32>,
    return
  }
  func.func @transform_0(%arg0: i32, %arg1: i32) -> (i32, i32, i32, i32) {
    %c0_i32 = arith.constant 0 : i32
    %c0_i32_0 = arith.constant 0 : i32
    %c0_i32_1 = arith.constant 0 : i32
    return %arg0, %c0_i32, %c0_i32_0, %arg1 : i32, i32, i32, i32
  }
  func.func @transform_1(%arg0: i32, %arg1: i32) -> (i32, i32, i32) {
    %c0_i32 = arith.constant 0 : i32
    %c0_i32_0 = arith.constant 0 : i32
    %c0_i32_1 = arith.constant 0 : i32
    return %c0_i32, %c0_i32_0, %arg1 : i32, i32, i32
  }
  func.func @transform_2(%arg0: i32, %arg1: i32) -> (i32, i32) {
    %c0_i32 = arith.constant 0 : i32
    %c0_i32_0 = arith.constant 0 : i32
    return %c0_i32, %arg1 : i32, i32
  }
  func.func @transform_3(%arg0: i32, %arg1: i32) -> (i32, i32, i32, i32) {
    %c0_i32 = arith.constant 0 : i32
    %c0_i32_0 = arith.constant 0 : i32
    %c0_i32_1 = arith.constant 0 : i32
    return %arg0, %c0_i32, %c0_i32_0, %arg1 : i32, i32, i32, i32
  }
}

</mosaic_0001>

<llo_original>
// kernel: tpu_custom_call.1
$region0: #{tpu_custom_call.1}
  #allocation0 [shape = 'u32[]', space=smem, size = 0x4, offset = 0x4, fixed_abs, tag = 'smem constant byte address 0x4 - core index']
  #allocation1 [shape = 'u32[144,128]{1,0:T(1,128)}', space=vmem, size = 0x12000, scoped, tag = 'internal scratch']
  #allocation2 [shape = 'f32[18,18,4]{2,1,0:T(8,128)}', space=vmem, size = 0x36000, scoped, tag = 'scratch operand']
  %s0 = inlined_call_operand.vmem [shape: f32[2,16,16,4], index: 0, kind: input, shape index: {}]
  %s1 = inlined_call_operand.vmem [shape: f32[3,3,4], index: 1, kind: input, shape index: {}]
  %s2 = inlined_call_operand.vmem [shape: f32[1,4], index: 2, kind: input, shape index: {}]
  %s3 = inlined_call_operand.vmem [shape: f32[2,16,16,4], index: 3, kind: output, shape index: {}]
  %s4 = sld [smem:[#allocation0]]
  $region45: #{tpu_custom_call.1} parent=0
    _
  %s6 = ssub.s32 1, %s4
  %s7 = scalar_select 0, %s6, %s4
  loop: start=0, step=1, limit=4
  $region2: #{tpu_custom_call.1} parent=0 // loop_pre_header
    _
  $region3: #{tpu_custom_call.1} parent=0 // loop_header
    %s9 = sphi 0, %s13
    %p10 = scmp.ge.s32.totalorder %s9, 4
    %s16 = sphi 0, %s28
    %s17 = sphi 0, %s24
    %s18 = sphi 0, %s16
    %s19 = sphi 0, %s17
    %s20 = sphi 0, %s18
    %s21 = sphi 0, %s19
    %s33 = sphi 0, %s35
    %s36 = sphi 0, %s33
    %s37 = sphi 0, %s36
    %s53 = sphi 0, %s37
    %s59 = sphi 0, %s61
    %s62 = sphi 0, %s59
    %s63 = sphi 0, %s62
    %s79 = sphi 0, %s63
    %s85 = sphi 0, %s87
    %s88 = sphi 0, %s85
    %s89 = sphi 0, %s88
    %s105 = sphi 0, %s89
    %s113 = sphi 0, %s115
    %s116 = sphi 0, %s113
    %s117 = sphi 0, %s116
    %s133 = sphi 0, %s117
  $region4: #{tpu_custom_call.1} parent=0 // loop_header_branch
    %12 = sbr.rel (%p10) target = $region8
  $region5: #{tpu_custom_call.1} parent=0 // loop_body
    %s14 = ssub.s32 %s9, 1
    %s15 = ssub.s32 %s9, 2
    %s22 = sadd.s32 1, %s17
    %p23 = scmp.ge.s32.totalorder %s22, 1
    %s24 = scalar_select %p23, 0, %s22
    %s25 = sadd.s32 1, %s16
    %s26 = scalar_select %p23, %s25, %s16
    %p27 = scmp.ge.s32.totalorder %s26, 2
    %s28 = scalar_select %p27, 0, %s26
    %s29 = ssub.s32 %s16, %s28
    %s30 = ssub.s32 %s17, %s24
    %s31 = sor.u32 %s29, %s30
    %p32 = scmp.eq.s32.totalorder %s31, 0
    %s34 = sadd.s32 %s33, 1
    %s35 = scalar_select %p32, %s33, %s34
    %p38 = pneg %p32
    %p39 = scmp.eq.s32.totalorder %s9, 1
    %p40 = por %p38, %p39
    %p41 = scmp.ne.s32.totalorder %s33, %s36
    %p42 = scmp.eq.s32.totalorder %s9, 0
    %p43 = por %p41, %p42
    %p44 = scmp.ne.s32.totalorder %s33, %s36
    %p45 = scmp.eq.s32.totalorder %s14, 1
    %p46 = por %p44, %p45
    %p47 = scmp.ne.s32.totalorder %s36, %s37
    %p48 = scmp.eq.s32.totalorder %s14, 0
    %p49 = por %p47, %p48
    %p50 = scmp.ne.s32.totalorder %s36, %s37
    %p51 = scmp.eq.s32.totalorder %s15, 1
    %p52 = por %p50, %p51
    %p54 = scmp.ne.s32.totalorder %s37, %s53
    %p55 = scmp.eq.s32.totalorder %s15, 0
    %p56 = por %p54, %p55
    %s57 = ssub.s32 %s17, %s24
    %p58 = scmp.eq.s32.totalorder %s57, 0
    %s60 = sadd.s32 %s59, 1
    %s61 = scalar_select %p58, %s59, %s60
    %p64 = pneg %p58
    %p65 = scmp.eq.s32.totalorder %s9, 1
    %p66 = por %p64, %p65
    %p67 = scmp.ne.s32.totalorder %s59, %s62
    %p68 = scmp.eq.s32.totalorder %s9, 0
    %p69 = por %p67, %p68
    %p70 = scmp.ne.s32.totalorder %s59, %s62
    %p71 = scmp.eq.s32.totalorder %s14, 1
    %p72 = por %p70, %p71
    %p73 = scmp.ne.s32.totalorder %s62, %s63
    %p74 = scmp.eq.s32.totalorder %s14, 0
    %p75 = por %p73, %p74
    %p76 = scmp.ne.s32.totalorder %s62, %s63
    %p77 = scmp.eq.s32.totalorder %s15, 1
    %p78 = por %p76, %p77
    %p80 = scmp.ne.s32.totalorder %s63, %s79
    %p81 = scmp.eq.s32.totalorder %s15, 0
    %p82 = por %p80, %p81
    %s83 = ssub.s32 %s17, %s24
    %p84 = scmp.eq.s32.totalorder %s83, 0
    %s86 = sadd.s32 %s85, 1
    %s87 = scalar_select %p84, %s85, %s86
    %p90 = pneg %p84
    %p91 = scmp.eq.s32.totalorder %s9, 1
    %p92 = por %p90, %p91
    %p93 = scmp.ne.s32.totalorder %s85, %s88
    %p94 = scmp.eq.s32.totalorder %s9, 0
    %p95 = por %p93, %p94
    %p96 = scmp.ne.s32.totalorder %s85, %s88
    %p97 = scmp.eq.s32.totalorder %s14, 1
    %p98 = por %p96, %p97
    %p99 = scmp.ne.s32.totalorder %s88, %s89
    %p100 = scmp.eq.s32.totalorder %s14, 0
    %p101 = por %p99, %p100
    %p102 = scmp.ne.s32.totalorder %s88, %s89
    %p103 = scmp.eq.s32.totalorder %s15, 1
    %p104 = por %p102, %p103
    %p106 = scmp.ne.s32.totalorder %s89, %s105
    %p107 = scmp.eq.s32.totalorder %s15, 0
    %p108 = por %p106, %p107
    %s109 = ssub.s32 %s16, %s28
    %s110 = ssub.s32 %s17, %s24
    %s111 = sor.u32 %s109, %s110
    %p112 = scmp.eq.s32.totalorder %s111, 0
    %s114 = sadd.s32 %s113, 1
    %s115 = scalar_select %p112, %s113, %s114
    %p118 = pneg %p112
    %p119 = scmp.eq.s32.totalorder %s9, 1
    %p120 = por %p118, %p119
    %p121 = scmp.ne.s32.totalorder %s113, %s116
    %p122 = scmp.eq.s32.totalorder %s9, 0
    %p123 = por %p121, %p122
    %p124 = scmp.ne.s32.totalorder %s113, %s116
    %p125 = scmp.eq.s32.totalorder %s14, 1
    %p126 = por %p124, %p125
    %p127 = scmp.ne.s32.totalorder %s116, %s117
    %p128 = scmp.eq.s32.totalorder %s14, 0
    %p129 = por %p127, %p128
    %p130 = scmp.ne.s32.totalorder %s116, %s117
    %p131 = scmp.eq.s32.totalorder %s15, 1
    %p132 = por %p130, %p131
    %p134 = scmp.ne.s32.totalorder %s117, %s133
    %p135 = scmp.eq.s32.totalorder %s15, 0
    %p136 = por %p134, %p135
    %p137 = scmp.le.s32.totalorder 1, %s9
    %p138 = scmp.lt.s32.totalorder %s9, 3
    %p139 = pnand %p137, %p138
    %p140 = pneg %p139
    // Predicated region
    $region9: #{tpu_custom_call.1} parent=5 // pred_check
      _
    $region10: #{tpu_custom_call.1} parent=5 // pred_check_branch
      %142 = sbr.rel (%p139) target = $region12
    $region11: #{tpu_custom_call.1} parent=5 // pred_region
      %s143 = ssub.s32 %s9, 1
      // Predicated region
      $region13: #{tpu_custom_call.1} parent=11 // pred_check
        %p144 = pneg %p75
      $region14: #{tpu_custom_call.1} parent=11 // pred_check_branch
        %146 = sbr.rel (%p144) target = $region16
      $region15: #{tpu_custom_call.1} parent=11 // pred_region
        %p147 = scmp.lt.s32.totalorder %s19, 0
        %s148 = scalar_select %p147, %s19, 0
        %s149 = smul.addr %s148, 4
        %s150 = scalar_lea.vmem %s1, %s149
      $region16: #{tpu_custom_call.1} parent=11 // pred_fallthru
        _
      // Predicated region
      $region17: #{tpu_custom_call.1} parent=11 // pred_check
        %p151 = pneg %p101
      $region18: #{tpu_custom_call.1} parent=11 // pred_check_branch
        %153 = sbr.rel (%p151) target = $region20
      $region19: #{tpu_custom_call.1} parent=11 // pred_region
        %p154 = scmp.lt.s32.totalorder %s19, 0
        %s155 = scalar_select %p154, %s19, 0
        %s156 = scalar_lea.vmem %s2, %s155
      $region20: #{tpu_custom_call.1} parent=11 // pred_fallthru
        _
    $region12: #{tpu_custom_call.1} parent=5 // pred_fallthru
      _
    %p157 = scmp.lt.s32.totalorder %s9, 2
    // Predicated region
    $region21: #{tpu_custom_call.1} parent=5 // pred_check
      %p158 = pneg %p157
    $region22: #{tpu_custom_call.1} parent=5 // pred_check_branch
      %160 = sbr.rel (%p158) target = $region24
    $region23: #{tpu_custom_call.1} parent=5 // pred_region
      // Predicated region
      $region25: #{tpu_custom_call.1} parent=23 // pred_check
        %p161 = pneg %p43
      $region26: #{tpu_custom_call.1} parent=23 // pred_check_branch
        %163 = sbr.rel (%p161) target = $region28
      $region27: #{tpu_custom_call.1} parent=23 // pred_region
        %p164 = scmp.lt.s32.totalorder %s16, 1
        %s165 = scalar_select %p164, %s16, 1
        %p166 = scmp.lt.s32.totalorder %s17, 0
        %s167 = scalar_select %p166, %s17, 0
        %s168 = smul.addr %s165, 32
        %s169 = sadd.s32 %s167, %s168
        %s170 = smul.addr %s169, 8
        %s171 = scalar_lea.vmem %s0, %s170
      $region28: #{tpu_custom_call.1} parent=23 // pred_fallthru
        _
    $region24: #{tpu_custom_call.1} parent=5 // pred_fallthru
      _
    %p172 = scmp.le.s32.totalorder 1, %s9
    %p173 = scmp.lt.s32.totalorder %s9, 3
    %p174 = pnand %p172, %p173
    %p175 = pneg %p174
    // Predicated region
    $region29: #{tpu_custom_call.1} parent=5 // pred_check
      _
    $region30: #{tpu_custom_call.1} parent=5 // pred_check_branch
      %177 = sbr.rel (%p174) target = $region32
    $region31: #{tpu_custom_call.1} parent=5 // pred_region
      %s178 = ssub.s32 %s9, 1
      %p179 = scmp.lt.s32.totalorder %s18, 1
      %s180 = scalar_select %p179, %s18, 1
      %p181 = scmp.lt.s32.totalorder %s19, 0
      %s182 = scalar_select %p181, %s19, 0
      %s183 = smul.addr %s180, 32
      %s184 = sadd.s32 %s182, %s183
      %s185 = smul.addr %s184, 8
      %s186 = scalar_lea.vmem %s0, %s185
      %p187 = pneg %p49
      %p188 = pneg %p46
      %p189 = scmp.lt.s32.totalorder %s19, 0
      %s190 = scalar_select %p189, %s19, 0
      %s191 = smul.addr %s190, 4
      %s192 = scalar_lea.vmem %s1, %s191
      %p193 = pneg %p75
      %p194 = pneg %p72
      %p195 = scmp.lt.s32.totalorder %s19, 0
      %s196 = scalar_select %p195, %s19, 0
      %s197 = scalar_lea.vmem %s2, %s196
      %p198 = pneg %p101
      %p199 = pneg %p98
      %p200 = pneg %p129
      %p201 = pneg %p126
      %p202 = scmp.lt.s32.totalorder %s18, 1
      %s203 = scalar_select %p202, %s18, 1
      %p204 = scmp.lt.s32.totalorder %s19, 0
      %s205 = scalar_select %p204, %s19, 0
      %s206 = smul.addr %s203, 32
      %s207 = sadd.s32 %s205, %s206
      %s208 = smul.addr %s207, 8
      %s209 = scalar_lea.vmem %s3, %s208
      %p210 = scmp.lt.s32.totalorder %s18, 1
      %s211 = scalar_select %p210, %s18, 1
      %p212 = scmp.lt.s32.totalorder %s19, 0
      %s213 = scalar_select %p212, %s19, 0
      %s214 = smul.addr %s211, 32
      %s215 = sadd.s32 %s213, %s214
      %s216 = smul.addr %s215, 8
      %s217 = scalar_lea.vmem %s0, %s216
      %p218 = scmp.lt.s32.totalorder %s19, 0
      %s219 = scalar_select %p218, %s19, 0
      %s220 = smul.addr %s219, 4
      %s221 = scalar_lea.vmem %s1, %s220
      %p222 = scmp.lt.s32.totalorder %s19, 0
      %s223 = scalar_select %p222, %s19, 0
      %s224 = scalar_lea.vmem %s2, %s223
      %p225 = scmp.lt.s32.totalorder %s18, 1
      %s226 = scalar_select %p225, %s18, 1
      %p227 = scmp.lt.s32.totalorder %s19, 0
      %s228 = scalar_select %p227, %s19, 0
      %s229 = smul.addr %s226, 32
      %s230 = sadd.s32 %s228, %s229
      %s231 = smul.addr %s230, 8
      %s232 = scalar_lea.vmem %s3, %s231
      %vm233 = vcmask 31744
      %234 = vst.msk [vmem:[#allocation2] sm:$0xff] %vm233, 0.0
      %235 = vst.msk [vmem:[#allocation2 + $0x8] sm:$0xff] %vm233, 0.0
      %vm236 = vcmask 25600
      %237 = vst.msk [vmem:[#allocation2 + $0x10] sm:$0x3] %vm236, 0.0
      %s238 = scalar_lea.vmem [#allocation2], 408
      %239 = vst.msk [vmem:[%s238] sm:$0xff] %vm233, 0.0
      %240 = vst.msk [vmem:[%s238 + $0x8] sm:$0xff] %vm233, 0.0
      %241 = vst.msk [vmem:[%s238 + $0x10] sm:$0x3] %vm236, 0.0
      %vm242 = vcmask 24576
      %243 = vst.msk [vmem:[#allocation2] sm:$0x1] %vm242, 0.0
      %244 = vst.msk [vmem:[#allocation2 + $0x18] sm:$0x1] %vm242, 0.0
      %245 = vst.msk [vmem:[#allocation2 + $0x30] sm:$0x1] %vm242, 0.0
      %246 = vst.msk [vmem:[#allocation2 + $0x48] sm:$0x1] %vm242, 0.0
      %247 = vst.msk [vmem:[#allocation2 + $0x60] sm:$0x1] %vm242, 0.0
      %248 = vst.msk [vmem:[#allocation2 + $0x78] sm:$0x1] %vm242, 0.0
      %249 = vst.msk [vmem:[#allocation2 + $0x90] sm:$0x1] %vm242, 0.0
      %250 = vst.msk [vmem:[#allocation2 + $0xa8] sm:$0x1] %vm242, 0.0
      %251 = vst.msk [vmem:[#allocation2 + $0xc0] sm:$0x1] %vm242, 0.0
      %252 = vst.msk [vmem:[#allocation2 + $0xd8] sm:$0x1] %vm242, 0.0
      %253 = vst.msk [vmem:[#allocation2 + $0xf0] sm:$0x1] %vm242, 0.0
      %254 = vst.msk [vmem:[#allocation2 + $0x108] sm:$0x1] %vm242, 0.0
      %255 = vst.msk [vmem:[#allocation2 + $0x120] sm:$0x1] %vm242, 0.0
      %256 = vst.msk [vmem:[#allocation2 + $0x138] sm:$0x1] %vm242, 0.0
      %257 = vst.msk [vmem:[#allocation2 + $0x150] sm:$0x1] %vm242, 0.0
      %258 = vst.msk [vmem:[#allocation2 + $0x168] sm:$0x1] %vm242, 0.0
      %259 = vst.msk [vmem:[#allocation2 + $0x180] sm:$0x1] %vm242, 0.0
      %260 = vst.msk [vmem:[#allocation2 + $0x198] sm:$0x1] %vm242, 0.0
      %261 = vst.msk [vmem:[#allocation2 + $0x11] sm:$0x1] %vm242, 0.0
      %262 = vst.msk [vmem:[#allocation2 + $0x29] sm:$0x1] %vm242, 0.0
      %263 = vst.msk [vmem:[#allocation2 + $0x41] sm:$0x1] %vm242, 0.0
      %264 = vst.msk [vmem:[#allocation2 + $0x59] sm:$0x1] %vm242, 0.0
      %265 = vst.msk [vmem:[#allocation2 + $0x71] sm:$0x1] %vm242, 0.0
      %266 = vst.msk [vmem:[#allocation2 + $0x89] sm:$0x1] %vm242, 0.0
      %267 = vst.msk [vmem:[#allocation2 + $0xa1] sm:$0x1] %vm242, 0.0
      %268 = vst.msk [vmem:[#allocation2 + $0xb9] sm:$0x1] %vm242, 0.0
      %269 = vst.msk [vmem:[#allocation2 + $0xd1] sm:$0x1] %vm242, 0.0
      %270 = vst.msk [vmem:[#allocation2 + $0xe9] sm:$0x1] %vm242, 0.0
      %271 = vst.msk [vmem:[#allocation2 + $0x101] sm:$0x1] %vm242, 0.0
      %272 = vst.msk [vmem:[#allocation2 + $0x119] sm:$0x1] %vm242, 0.0
      %273 = vst.msk [vmem:[#allocation2 + $0x131] sm:$0x1] %vm242, 0.0
      %274 = vst.msk [vmem:[#allocation2 + $0x149] sm:$0x1] %vm242, 0.0
      %275 = vst.msk [vmem:[#allocation2 + $0x161] sm:$0x1] %vm242, 0.0
      %276 = vst.msk [vmem:[#allocation2 + $0x179] sm:$0x1] %vm242, 0.0
      %277 = vst.msk [vmem:[#allocation2 + $0x191] sm:$0x1] %vm242, 0.0
      %278 = vst.msk [vmem:[#allocation2 + $0x1a9] sm:$0x1] %vm242, 0.0
      %v279 = vld [vmem:[%s217] sm:$0xff]
      %v280 = vld [vmem:[%s217 + $0x8] sm:$0xff]
      %v281 = vld [vmem:[%s217 + $0x10] sm:$0xff]
      %v282 = vld [vmem:[%s217 + $0x18] sm:$0xff]
      %v283 = vld [vmem:[%s217 + $0x20] sm:$0xff]
      %v284 = vld [vmem:[%s217 + $0x28] sm:$0xff]
      %v285 = vld [vmem:[%s217 + $0x30] sm:$0xff]
      %v286 = vld [vmem:[%s217 + $0x38] sm:$0xff]
      %v287 = vld [vmem:[%s217 + $0x40] sm:$0xff]
      %v288 = vld [vmem:[%s217 + $0x48] sm:$0xff]
      %v289 = vld [vmem:[%s217 + $0x50] sm:$0xff]
      %v290 = vld [vmem:[%s217 + $0x58] sm:$0xff]
      %v291 = vld [vmem:[%s217 + $0x60] sm:$0xff]
      %v292 = vld [vmem:[%s217 + $0x68] sm:$0xff]
      %v293 = vld [vmem:[%s217 + $0x70] sm:$0xff]
      %v294 = vld [vmem:[%s217 + $0x78] sm:$0xff]
      %v295 = vld [vmem:[%s217 + $0x80] sm:$0xff]
      %v296 = vld [vmem:[%s217 + $0x88] sm:$0xff]
      %v297 = vld [vmem:[%s217 + $0x90] sm:$0xff]
      %v298 = vld [vmem:[%s217 + $0x98] sm:$0xff]
      %v299 = vld [vmem:[%s217 + $0xa0] sm:$0xff]
      %v300 = vld [vmem:[%s217 + $0xa8] sm:$0xff]
      %v301 = vld [vmem:[%s217 + $0xb0] sm:$0xff]
      %v302 = vld [vmem:[%s217 + $0xb8] sm:$0xff]
      %v303 = vld [vmem:[%s217 + $0xc0] sm:$0xff]
      %v304 = vld [vmem:[%s217 + $0xc8] sm:$0xff]
      %v305 = vld [vmem:[%s217 + $0xd0] sm:$0xff]
      %v306 = vld [vmem:[%s217 + $0xd8] sm:$0xff]
      %v307 = vld [vmem:[%s217 + $0xe0] sm:$0xff]
      %v308 = vld [vmem:[%s217 + $0xe8] sm:$0xff]
      %v309 = vld [vmem:[%s217 + $0xf0] sm:$0xff]
      %v310 = vld [vmem:[%s217 + $0xf8] sm:$0xff]
      %s311 = scalar_lea.vmem [#allocation2], 24
      %312 = vst.msk [vmem:[%s311 + $0x1] sm:$0xff] %vm233, %v279
      %313 = vst.msk [vmem:[%s311 + $0x9] sm:$0xff] %vm233, %v280
      %314 = vst.msk [vmem:[%s311 + $0x19] sm:$0xff] %vm233, %v281
      %315 = vst.msk [vmem:[%s311 + $0x21] sm:$0xff] %vm233, %v282
      %316 = vst.msk [vmem:[%s311 + $0x31] sm:$0xff] %vm233, %v283
      %317 = vst.msk [vmem:[%s311 + $0x39] sm:$0xff] %vm233, %v284
      %318 = vst.msk [vmem:[%s311 + $0x49] sm:$0xff] %vm233, %v285
      %319 = vst.msk [vmem:[%s311 + $0x51] sm:$0xff] %vm233, %v286
      %320 = vst.msk [vmem:[%s311 + $0x61] sm:$0xff] %vm233, %v287
      %321 = vst.msk [vmem:[%s311 + $0x69] sm:$0xff] %vm233, %v288
      %322 = vst.msk [vmem:[%s311 + $0x79] sm:$0xff] %vm233, %v289
      %323 = vst.msk [vmem:[%s311 + $0x81] sm:$0xff] %vm233, %v290
      %324 = vst.msk [vmem:[%s311 + $0x91] sm:$0xff] %vm233, %v291
      %325 = vst.msk [vmem:[%s311 + $0x99] sm:$0xff] %vm233, %v292
      %326 = vst.msk [vmem:[%s311 + $0xa9] sm:$0xff] %vm233, %v293
      %327 = vst.msk [vmem:[%s311 + $0xb1] sm:$0xff] %vm233, %v294
      %328 = vst.msk [vmem:[%s311 + $0xc1] sm:$0xff] %vm233, %v295
      %329 = vst.msk [vmem:[%s311 + $0xc9] sm:$0xff] %vm233, %v296
      %330 = vst.msk [vmem:[%s311 + $0xd9] sm:$0xff] %vm233, %v297
      %331 = vst.msk [vmem:[%s311 + $0xe1] sm:$0xff] %vm233, %v298
      %332 = vst.msk [vmem:[%s311 + $0xf1] sm:$0xff] %vm233, %v299
      %333 = vst.msk [vmem:[%s311 + $0xf9] sm:$0xff] %vm233, %v300
      %334 = vst.msk [vmem:[%s311 + $0x109] sm:$0xff] %vm233, %v301
      %335 = vst.msk [vmem:[%s311 + $0x111] sm:$0xff] %vm233, %v302
      %336 = vst.msk [vmem:[%s311 + $0x121] sm:$0xff] %vm233, %v303
      %337 = vst.msk [vmem:[%s311 + $0x129] sm:$0xff] %vm233, %v304
      %338 = vst.msk [vmem:[%s311 + $0x139] sm:$0xff] %vm233, %v305
      %339 = vst.msk [vmem:[%s311 + $0x141] sm:$0xff] %vm233, %v306
      %340 = vst.msk [vmem:[%s311 + $0x151] sm:$0xff] %vm233, %v307
      %341 = vst.msk [vmem:[%s311 + $0x159] sm:$0xff] %vm233, %v308
      %342 = vst.msk [vmem:[%s311 + $0x169] sm:$0xff] %vm233, %v309
      %343 = vst.msk [vmem:[%s311 + $0x171] sm:$0xff] %vm233, %v310
      %v344 = vld [vmem:[#allocation2] sm:$0xff]
      %v345 = vld [vmem:[#allocation2 + $0x8] sm:$0xff]
      %v346 = vld [vmem:[#allocation2 + $0x18] sm:$0xff]
      %v347 = vld [vmem:[#allocation2 + $0x20] sm:$0xff]
      %v348 = vld [vmem:[#allocation2 + $0x30] sm:$0xff]
      %v349 = vld [vmem:[#allocation2 + $0x38] sm:$0xff]
      %v350 = vld [vmem:[#allocation2 + $0x48] sm:$0xff]
      %v351 = vld [vmem:[#allocation2 + $0x50] sm:$0xff]
      %v352 = vld [vmem:[#allocation2 + $0x60] sm:$0xff]
      %v353 = vld [vmem:[#allocation2 + $0x68] sm:$0xff]
      %v354 = vld [vmem:[#allocation2 + $0x78] sm:$0xff]
      %v355 = vld [vmem:[#allocation2 + $0x80] sm:$0xff]
      %v356 = vld [vmem:[#allocation2 + $0x90] sm:$0xff]
      %v357 = vld [vmem:[#allocation2 + $0x98] sm:$0xff]
      %v358 = vld [vmem:[#allocation2 + $0xa8] sm:$0xff]
      %v359 = vld [vmem:[#allocation2 + $0xb0] sm:$0xff]
      %v360 = vld [vmem:[#allocation2 + $0xc0] sm:$0xff]
      %v361 = vld [vmem:[#allocation2 + $0xc8] sm:$0xff]
      %v362 = vld [vmem:[#allocation2 + $0xd8] sm:$0xff]
      %v363 = vld [vmem:[#allocation2 + $0xe0] sm:$0xff]
      %v364 = vld [vmem:[#allocation2 + $0xf0] sm:$0xff]
      %v365 = vld [vmem:[#allocation2 + $0xf8] sm:$0xff]
      %v366 = vld [vmem:[#allocation2 + $0x108] sm:$0xff]
      %v367 = vld [vmem:[#allocation2 + $0x110] sm:$0xff]
      %v368 = vld [vmem:[#allocation2 + $0x120] sm:$0xff]
      %v369 = vld [vmem:[#allocation2 + $0x128] sm:$0xff]
      %v370 = vld [vmem:[#allocation2 + $0x138] sm:$0xff]
      %v371 = vld [vmem:[#allocation2 + $0x140] sm:$0xff]
      %v372 = vld [vmem:[#allocation2 + $0x150] sm:$0xff]
      %v373 = vld [vmem:[#allocation2 + $0x158] sm:$0xff]
      %v374 = vld [vmem:[#allocation2 + $0x168] sm:$0xff]
      %v375 = vld [vmem:[#allocation2 + $0x170] sm:$0xff]
      %v376 = vld [vmem:[%s221] sm:$0x1]
      %v377 = vlaneseq
      %v378 = vshrl.u32 %v377, 7
      %v379 = vsub.s32 0, %v378
      %v380 = vrot.slane %v376, %v379
      %v381 = vmul.f32 %v344, %v380
      %v382 = vmul.f32 %v345, %v380
      %v383 = vmul.f32 %v346, %v380
      %v384 = vmul.f32 %v347, %v380
      %v385 = vmul.f32 %v348, %v380
      %v386 = vmul.f32 %v349, %v380
      %v387 = vmul.f32 %v350, %v380
      %v388 = vmul.f32 %v351, %v380
      %v389 = vmul.f32 %v352, %v380
      %v390 = vmul.f32 %v353, %v380
      %v391 = vmul.f32 %v354, %v380
      %v392 = vmul.f32 %v355, %v380
      %v393 = vmul.f32 %v356, %v380
      %v394 = vmul.f32 %v357, %v380
      %v395 = vmul.f32 %v358, %v380
      %v396 = vmul.f32 %v359, %v380
      %v397 = vmul.f32 %v360, %v380
      %v398 = vmul.f32 %v361, %v380
      %v399 = vmul.f32 %v362, %v380
      %v400 = vmul.f32 %v363, %v380
      %v401 = vmul.f32 %v364, %v380
      %v402 = vmul.f32 %v365, %v380
      %v403 = vmul.f32 %v366, %v380
      %v404 = vmul.f32 %v367, %v380
      %v405 = vmul.f32 %v368, %v380
      %v406 = vmul.f32 %v369, %v380
      %v407 = vmul.f32 %v370, %v380
      %v408 = vmul.f32 %v371, %v380
      %v409 = vmul.f32 %v372, %v380
      %v410 = vmul.f32 %v373, %v380
      %v411 = vmul.f32 %v374, %v380
      %v412 = vmul.f32 %v375, %v380
      %v413 = vadd.f32 %v381, 0.0
      %v414 = vadd.f32 %v382, 0.0
      %v415 = vadd.f32 %v383, 0.0
      %v416 = vadd.f32 %v384, 0.0
      %v417 = vadd.f32 %v385, 0.0
      %v418 = vadd.f32 %v386, 0.0
      %v419 = vadd.f32 %v387, 0.0
      %v420 = vadd.f32 %v388, 0.0
      %v421 = vadd.f32 %v389, 0.0
      %v422 = vadd.f32 %v390, 0.0
      %v423 = vadd.f32 %v391, 0.0
      %v424 = vadd.f32 %v392, 0.0
      %v425 = vadd.f32 %v393, 0.0
      %v426 = vadd.f32 %v394, 0.0
      %v427 = vadd.f32 %v395, 0.0
      %v428 = vadd.f32 %v396, 0.0
      %v429 = vadd.f32 %v397, 0.0
      %v430 = vadd.f32 %v398, 0.0
      %v431 = vadd.f32 %v399, 0.0
      %v432 = vadd.f32 %v400, 0.0
      %v433 = vadd.f32 %v401, 0.0
      %v434 = vadd.f32 %v402, 0.0
      %v435 = vadd.f32 %v403, 0.0
      %v436 = vadd.f32 %v404, 0.0
      %v437 = vadd.f32 %v405, 0.0
      %v438 = vadd.f32 %v406, 0.0
      %v439 = vadd.f32 %v407, 0.0
      %v440 = vadd.f32 %v408, 0.0
      %v441 = vadd.f32 %v409, 0.0
      %v442 = vadd.f32 %v410, 0.0
      %v443 = vadd.f32 %v411, 0.0
      %v444 = vadd.f32 %v412, 0.0
      %v445 = vld [vmem:[#allocation2 + $0x1] sm:$0xff]
      %v446 = vld [vmem:[#allocation2 + $0x9] sm:$0xff]
      %v447 = vld [vmem:[#allocation2 + $0x19] sm:$0xff]
      %v448 = vld [vmem:[#allocation2 + $0x21] sm:$0xff]
      %v449 = vld [vmem:[#allocation2 + $0x31] sm:$0xff]
      %v450 = vld [vmem:[#allocation2 + $0x39] sm:$0xff]
      %v451 = vld [vmem:[#allocation2 + $0x49] sm:$0xff]
      %v452 = vld [vmem:[#allocation2 + $0x51] sm:$0xff]
      %v453 = vld [vmem:[#allocation2 + $0x61] sm:$0xff]
      %v454 = vld [vmem:[#allocation2 + $0x69] sm:$0xff]
      %v455 = vld [vmem:[#allocation2 + $0x79] sm:$0xff]
      %v456 = vld [vmem:[#allocation2 + $0x81] sm:$0xff]
      %v457 = vld [vmem:[#allocation2 + $0x91] sm:$0xff]
      %v458 = vld [vmem:[#allocation2 + $0x99] sm:$0xff]
      %v459 = vld [vmem:[#allocation2 + $0xa9] sm:$0xff]
      %v460 = vld [vmem:[#allocation2 + $0xb1] sm:$0xff]
      %v461 = vld [vmem:[#allocation2 + $0xc1] sm:$0xff]
      %v462 = vld [vmem:[#allocation2 + $0xc9] sm:$0xff]
      %v463 = vld [vmem:[#allocation2 + $0xd9] sm:$0xff]
      %v464 = vld [vmem:[#allocation2 + $0xe1] sm:$0xff]
      %v465 = vld [vmem:[#allocation2 + $0xf1] sm:$0xff]
      %v466 = vld [vmem:[#allocation2 + $0xf9] sm:$0xff]
      %v467 = vld [vmem:[#allocation2 + $0x109] sm:$0xff]
      %v468 = vld [vmem:[#allocation2 + $0x111] sm:$0xff]
      %v469 = vld [vmem:[#allocation2 + $0x121] sm:$0xff]
      %v470 = vld [vmem:[#allocation2 + $0x129] sm:$0xff]
      %v471 = vld [vmem:[#allocation2 + $0x139] sm:$0xff]
      %v472 = vld [vmem:[#allocation2 + $0x141] sm:$0xff]
      %v473 = vld [vmem:[#allocation2 + $0x151] sm:$0xff]
      %v474 = vld [vmem:[#allocation2 + $0x159] sm:$0xff]
      %v475 = vld [vmem:[#allocation2 + $0x169] sm:$0xff]
      %v476 = vld [vmem:[#allocation2 + $0x171] sm:$0xff]
      %v477 = vld [vmem:[%s221 + $0x1] sm:$0x1]
      %v478 = vlaneseq
      %v479 = vshrl.u32 %v478, 7
      %v480 = vsub.s32 0, %v479
      %v481 = vrot.slane %v477, %v480
      %v482 = vmul.f32 %v445, %v481
      %v483 = vmul.f32 %v446, %v481
      %v484 = vmul.f32 %v447, %v481
      %v485 = vmul.f32 %v448, %v481
      %v486 = vmul.f32 %v449, %v481
      %v487 = vmul.f32 %v450, %v481
      %v488 = vmul.f32 %v451, %v481
      %v489 = vmul.f32 %v452, %v481
      %v490 = vmul.f32 %v453, %v481
      %v491 = vmul.f32 %v454, %v481
      %v492 = vmul.f32 %v455, %v481
      %v493 = vmul.f32 %v456, %v481
      %v494 = vmul.f32 %v457, %v481
      %v495 = vmul.f32 %v458, %v481
      %v496 = vmul.f32 %v459, %v481
      %v497 = vmul.f32 %v460, %v481
      %v498 = vmul.f32 %v461, %v481
      %v499 = vmul.f32 %v462, %v481
      %v500 = vmul.f32 %v463, %v481
      %v501 = vmul.f32 %v464, %v481
      %v502 = vmul.f32 %v465, %v481
      %v503 = vmul.f32 %v466, %v481
      %v504 = vmul.f32 %v467, %v481
      %v505 = vmul.f32 %v468, %v481
      %v506 = vmul.f32 %v469, %v481
      %v507 = vmul.f32 %v470, %v481
      %v508 = vmul.f32 %v471, %v481
      %v509 = vmul.f32 %v472, %v481
      %v510 = vmul.f32 %v473, %v481
      %v511 = vmul.f32 %v474, %v481
      %v512 = vmul.f32 %v475, %v481
      %v513 = vmul.f32 %v476, %v481
      %v514 = vadd.f32 %v413, %v482
      %v515 = vadd.f32 %v414, %v483
      %v516 = vadd.f32 %v415, %v484
      %v517 = vadd.f32 %v416, %v485
      %v518 = vadd.f32 %v417, %v486
      %v519 = vadd.f32 %v418, %v487
      %v520 = vadd.f32 %v419, %v488
      %v521 = vadd.f32 %v420, %v489
      %v522 = vadd.f32 %v421, %v490
      %v523 = vadd.f32 %v422, %v491
      %v524 = vadd.f32 %v423, %v492
      %v525 = vadd.f32 %v424, %v493
      %v526 = vadd.f32 %v425, %v494
      %v527 = vadd.f32 %v426, %v495
      %v528 = vadd.f32 %v427, %v496
      %v529 = vadd.f32 %v428, %v497
      %v530 = vadd.f32 %v429, %v498
      %v531 = vadd.f32 %v430, %v499
      %v532 = vadd.f32 %v431, %v500
      %v533 = vadd.f32 %v432, %v501
      %v534 = vadd.f32 %v433, %v502
      %v535 = vadd.f32 %v434, %v503
      %v536 = vadd.f32 %v435, %v504
      %v537 = vadd.f32 %v436, %v505
      %v538 = vadd.f32 %v437, %v506
      %v539 = vadd.f32 %v438, %v507
      %v540 = vadd.f32 %v439, %v508
      %v541 = vadd.f32 %v440, %v509
      %v542 = vadd.f32 %v441, %v510
      %v543 = vadd.f32 %v442, %v511
      %v544 = vadd.f32 %v443, %v512
      %v545 = vadd.f32 %v444, %v513
      %v546 = vld [vmem:[#allocation2 + $0x2] sm:$0xff]
      %v547 = vld [vmem:[#allocation2 + $0xa] sm:$0xff]
      %v548 = vld [vmem:[#allocation2 + $0x1a] sm:$0xff]
      %v549 = vld [vmem:[#allocation2 + $0x22] sm:$0xff]
      %v550 = vld [vmem:[#allocation2 + $0x32] sm:$0xff]
      %v551 = vld [vmem:[#allocation2 + $0x3a] sm:$0xff]
      %v552 = vld [vmem:[#allocation2 + $0x4a] sm:$0xff]
      %v553 = vld [vmem:[#allocation2 + $0x52] sm:$0xff]
      %v554 = vld [vmem:[#allocation2 + $0x62] sm:$0xff]
      %v555 = vld [vmem:[#allocation2 + $0x6a] sm:$0xff]
      %v556 = vld [vmem:[#allocation2 + $0x7a] sm:$0xff]
      %v557 = vld [vmem:[#allocation2 + $0x82] sm:$0xff]
      %v558 = vld [vmem:[#allocation2 + $0x92] sm:$0xff]
      %v559 = vld [vmem:[#allocation2 + $0x9a] sm:$0xff]
      %v560 = vld [vmem:[#allocation2 + $0xaa] sm:$0xff]
      %v561 = vld [vmem:[#allocation2 + $0xb2] sm:$0xff]
      %v562 = vld [vmem:[#allocation2 + $0xc2] sm:$0xff]
      %v563 = vld [vmem:[#allocation2 + $0xca] sm:$0xff]
      %v564 = vld [vmem:[#allocation2 + $0xda] sm:$0xff]
      %v565 = vld [vmem:[#allocation2 + $0xe2] sm:$0xff]
      %v566 = vld [vmem:[#allocation2 + $0xf2] sm:$0xff]
      %v567 = vld [vmem:[#allocation2 + $0xfa] sm:$0xff]
      %v568 = vld [vmem:[#allocation2 + $0x10a] sm:$0xff]
      %v569 = vld [vmem:[#allocation2 + $0x112] sm:$0xff]
      %v570 = vld [vmem:[#allocation2 + $0x122] sm:$0xff]
      %v571 = vld [vmem:[#allocation2 + $0x12a] sm:$0xff]
      %v572 = vld [vmem:[#allocation2 + $0x13a] sm:$0xff]
      %v573 = vld [vmem:[#allocation2 + $0x142] sm:$0xff]
      %v574 = vld [vmem:[#allocation2 + $0x152] sm:$0xff]
      %v575 = vld [vmem:[#allocation2 + $0x15a] sm:$0xff]
      %v576 = vld [vmem:[#allocation2 + $0x16a] sm:$0xff]
      %v577 = vld [vmem:[#allocation2 + $0x172] sm:$0xff]
      %v578 = vld [vmem:[%s221 + $0x2] sm:$0x1]
      %v579 = vlaneseq
      %v580 = vshrl.u32 %v579, 7
      %v581 = vsub.s32 0, %v580
      %v582 = vrot.slane %v578, %v581
      %v583 = vmul.f32 %v546, %v582
      %v584 = vmul.f32 %v547, %v582
      %v585 = vmul.f32 %v548, %v582
      %v586 = vmul.f32 %v549, %v582
      %v587 = vmul.f32 %v550, %v582
      %v588 = vmul.f32 %v551, %v582
      %v589 = vmul.f32 %v552, %v582
      %v590 = vmul.f32 %v553, %v582
      %v591 = vmul.f32 %v554, %v582
      %v592 = vmul.f32 %v555, %v582
      %v593 = vmul.f32 %v556, %v582
      %v594 = vmul.f32 %v557, %v582
      %v595 = vmul.f32 %v558, %v582
      %v596 = vmul.f32 %v559, %v582
      %v597 = vmul.f32 %v560, %v582
      %v598 = vmul.f32 %v561, %v582
      %v599 = vmul.f32 %v562, %v582
      %v600 = vmul.f32 %v563, %v582
      %v601 = vmul.f32 %v564, %v582
      %v602 = vmul.f32 %v565, %v582
      %v603 = vmul.f32 %v566, %v582
      %v604 = vmul.f32 %v567, %v582
      %v605 = vmul.f32 %v568, %v582
      %v606 = vmul.f32 %v569, %v582
      %v607 = vmul.f32 %v570, %v582
      %v608 = vmul.f32 %v571, %v582
      %v609 = vmul.f32 %v572, %v582
      %v610 = vmul.f32 %v573, %v582
      %v611 = vmul.f32 %v574, %v582
      %v612 = vmul.f32 %v575, %v582
      %v613 = vmul.f32 %v576, %v582
      %v614 = vmul.f32 %v577, %v582
      %v615 = vadd.f32 %v514, %v583
      %v616 = vadd.f32 %v515, %v584
      %v617 = vadd.f32 %v516, %v585
      %v618 = vadd.f32 %v517, %v586
      %v619 = vadd.f32 %v518, %v587
      %v620 = vadd.f32 %v519, %v588
      %v621 = vadd.f32 %v520, %v589
      %v622 = vadd.f32 %v521, %v590
      %v623 = vadd.f32 %v522, %v591
      %v624 = vadd.f32 %v523, %v592
      %v625 = vadd.f32 %v524, %v593
      %v626 = vadd.f32 %v525, %v594
      %v627 = vadd.f32 %v526, %v595
      %v628 = vadd.f32 %v527, %v596
      %v629 = vadd.f32 %v528, %v597
      %v630 = vadd.f32 %v529, %v598
      %v631 = vadd.f32 %v530, %v599
      %v632 = vadd.f32 %v531, %v600
      %v633 = vadd.f32 %v532, %v601
      %v634 = vadd.f32 %v533, %v602
      %v635 = vadd.f32 %v534, %v603
      %v636 = vadd.f32 %v535, %v604
      %v637 = vadd.f32 %v536, %v605
      %v638 = vadd.f32 %v537, %v606
      %v639 = vadd.f32 %v538, %v607
      %v640 = vadd.f32 %v539, %v608
      %v641 = vadd.f32 %v540, %v609
      %v642 = vadd.f32 %v541, %v610
      %v643 = vadd.f32 %v542, %v611
      %v644 = vadd.f32 %v543, %v612
      %v645 = vadd.f32 %v544, %v613
      %v646 = vadd.f32 %v545, %v614
      %v647 = vld [vmem:[%s311] sm:$0xff]
      %v648 = vld [vmem:[%s311 + $0x8] sm:$0xff]
      %v649 = vld [vmem:[%s311 + $0x18] sm:$0xff]
      %v650 = vld [vmem:[%s311 + $0x20] sm:$0xff]
      %v651 = vld [vmem:[%s311 + $0x30] sm:$0xff]
      %v652 = vld [vmem:[%s311 + $0x38] sm:$0xff]
      %v653 = vld [vmem:[%s311 + $0x48] sm:$0xff]
      %v654 = vld [vmem:[%s311 + $0x50] sm:$0xff]
      %v655 = vld [vmem:[%s311 + $0x60] sm:$0xff]
      %v656 = vld [vmem:[%s311 + $0x68] sm:$0xff]
      %v657 = vld [vmem:[%s311 + $0x78] sm:$0xff]
      %v658 = vld [vmem:[%s311 + $0x80] sm:$0xff]
      %v659 = vld [vmem:[%s311 + $0x90] sm:$0xff]
      %v660 = vld [vmem:[%s311 + $0x98] sm:$0xff]
      %v661 = vld [vmem:[%s311 + $0xa8] sm:$0xff]
      %v662 = vld [vmem:[%s311 + $0xb0] sm:$0xff]
      %v663 = vld [vmem:[%s311 + $0xc0] sm:$0xff]
      %v664 = vld [vmem:[%s311 + $0xc8] sm:$0xff]
      %v665 = vld [vmem:[%s311 + $0xd8] sm:$0xff]
      %v666 = vld [vmem:[%s311 + $0xe0] sm:$0xff]
      %v667 = vld [vmem:[%s311 + $0xf0] sm:$0xff]
      %v668 = vld [vmem:[%s311 + $0xf8] sm:$0xff]
      %v669 = vld [vmem:[%s311 + $0x108] sm:$0xff]
      %v670 = vld [vmem:[%s311 + $0x110] sm:$0xff]
      %v671 = vld [vmem:[%s311 + $0x120] sm:$0xff]
      %v672 = vld [vmem:[%s311 + $0x128] sm:$0xff]
      %v673 = vld [vmem:[%s311 + $0x138] sm:$0xff]
      %v674 = vld [vmem:[%s311 + $0x140] sm:$0xff]
      %v675 = vld [vmem:[%s311 + $0x150] sm:$0xff]
      %v676 = vld [vmem:[%s311 + $0x158] sm:$0xff]
      %v677 = vld [vmem:[%s311 + $0x168] sm:$0xff]
      %v678 = vld [vmem:[%s311 + $0x170] sm:$0xff]
      %s679 = scalar_lea.vmem %s221, 4
      %v680 = vld [vmem:[%s679] sm:$0x1]
      %v681 = vlaneseq
      %v682 = vshrl.u32 %v681, 7
      %v683 = vsub.s32 0, %v682
      %v684 = vrot.slane %v680, %v683
      %v685 = vmul.f32 %v647, %v684
      %v686 = vmul.f32 %v648, %v684
      %v687 = vmul.f32 %v649, %v684
      %v688 = vmul.f32 %v650, %v684
      %v689 = vmul.f32 %v651, %v684
      %v690 = vmul.f32 %v652, %v684
      %v691 = vmul.f32 %v653, %v684
      %v692 = vmul.f32 %v654, %v684
      %v693 = vmul.f32 %v655, %v684
      %v694 = vmul.f32 %v656, %v684
      %v695 = vmul.f32 %v657, %v684
      %v696 = vmul.f32 %v658, %v684
      %v697 = vmul.f32 %v659, %v684
      %v698 = vmul.f32 %v660, %v684
      %v699 = vmul.f32 %v661, %v684
      %v700 = vmul.f32 %v662, %v684
      %v701 = vmul.f32 %v663, %v684
      %v702 = vmul.f32 %v664, %v684
      %v703 = vmul.f32 %v665, %v684
      %v704 = vmul.f32 %v666, %v684
      %v705 = vmul.f32 %v667, %v684
      %v706 = vmul.f32 %v668, %v684
      %v707 = vmul.f32 %v669, %v684
      %v708 = vmul.f32 %v670, %v684
      %v709 = vmul.f32 %v671, %v684
      %v710 = vmul.f32 %v672, %v684
      %v711 = vmul.f32 %v673, %v684
      %v712 = vmul.f32 %v674, %v684
      %v713 = vmul.f32 %v675, %v684
      %v714 = vmul.f32 %v676, %v684
      %v715 = vmul.f32 %v677, %v684
      %v716 = vmul.f32 %v678, %v684
      %v717 = vadd.f32 %v615, %v685
      %v718 = vadd.f32 %v616, %v686
      %v719 = vadd.f32 %v617, %v687
      %v720 = vadd.f32 %v618, %v688
      %v721 = vadd.f32 %v619, %v689
      %v722 = vadd.f32 %v620, %v690
      %v723 = vadd.f32 %v621, %v691
      %v724 = vadd.f32 %v622, %v692
      %v725 = vadd.f32 %v623, %v693
      %v726 = vadd.f32 %v624, %v694
      %v727 = vadd.f32 %v625, %v695
      %v728 = vadd.f32 %v626, %v696
      %v729 = vadd.f32 %v627, %v697
      %v730 = vadd.f32 %v628, %v698
      %v731 = vadd.f32 %v629, %v699
      %v732 = vadd.f32 %v630, %v700
      %v733 = vadd.f32 %v631, %v701
      %v734 = vadd.f32 %v632, %v702
      %v735 = vadd.f32 %v633, %v703
      %v736 = vadd.f32 %v634, %v704
      %v737 = vadd.f32 %v635, %v705
      %v738 = vadd.f32 %v636, %v706
      %v739 = vadd.f32 %v637, %v707
      %v740 = vadd.f32 %v638, %v708
      %v741 = vadd.f32 %v639, %v709
      %v742 = vadd.f32 %v640, %v710
      %v743 = vadd.f32 %v641, %v711
      %v744 = vadd.f32 %v642, %v712
      %v745 = vadd.f32 %v643, %v713
      %v746 = vadd.f32 %v644, %v714
      %v747 = vadd.f32 %v645, %v715
      %v748 = vadd.f32 %v646, %v716
      %v749 = vld [vmem:[%s311 + $0x1] sm:$0xff]
      %v750 = vld [vmem:[%s311 + $0x9] sm:$0xff]
      %v751 = vld [vmem:[%s311 + $0x19] sm:$0xff]
      %v752 = vld [vmem:[%s311 + $0x21] sm:$0xff]
      %v753 = vld [vmem:[%s311 + $0x31] sm:$0xff]
      %v754 = vld [vmem:[%s311 + $0x39] sm:$0xff]
      %v755 = vld [vmem:[%s311 + $0x49] sm:$0xff]
      %v756 = vld [vmem:[%s311 + $0x51] sm:$0xff]
      %v757 = vld [vmem:[%s311 + $0x61] sm:$0xff]
      %v758 = vld [vmem:[%s311 + $0x69] sm:$0xff]
      %v759 = vld [vmem:[%s311 + $0x79] sm:$0xff]
      %v760 = vld [vmem:[%s311 + $0x81] sm:$0xff]
      %v761 = vld [vmem:[%s311 + $0x91] sm:$0xff]
      %v762 = vld [vmem:[%s311 + $0x99] sm:$0xff]
      %v763 = vld [vmem:[%s311 + $0xa9] sm:$0xff]
      %v764 = vld [vmem:[%s311 + $0xb1] sm:$0xff]
      %v765 = vld [vmem:[%s311 + $0xc1] sm:$0xff]
      %v766 = vld [vmem:[%s311 + $0xc9] sm:$0xff]
      %v767 = vld [vmem:[%s311 + $0xd9] sm:$0xff]
      %v768 = vld [vmem:[%s311 + $0xe1] sm:$0xff]
      %v769 = vld [vmem:[%s311 + $0xf1] sm:$0xff]
      %v770 = vld [vmem:[%s311 + $0xf9] sm:$0xff]
      %v771 = vld [vmem:[%s311 + $0x109] sm:$0xff]
      %v772 = vld [vmem:[%s311 + $0x111] sm:$0xff]
      %v773 = vld [vmem:[%s311 + $0x121] sm:$0xff]
      %v774 = vld [vmem:[%s311 + $0x129] sm:$0xff]
      %v775 = vld [vmem:[%s311 + $0x139] sm:$0xff]
      %v776 = vld [vmem:[%s311 + $0x141] sm:$0xff]
      %v777 = vld [vmem:[%s311 + $0x151] sm:$0xff]
      %v778 = vld [vmem:[%s311 + $0x159] sm:$0xff]
      %v779 = vld [vmem:[%s311 + $0x169] sm:$0xff]
      %v780 = vld [vmem:[%s311 + $0x171] sm:$0xff]
      %v781 = vld [vmem:[%s679 + $0x1] sm:$0x1]
      %v782 = vlaneseq
      %v783 = vshrl.u32 %v782, 7
      %v784 = vsub.s32 0, %v783
      %v785 = vrot.slane %v781, %v784
      %v786 = vmul.f32 %v749, %v785
      %v787 = vmul.f32 %v750, %v785
      %v788 = vmul.f32 %v751, %v785
      %v789 = vmul.f32 %v752, %v785
      %v790 = vmul.f32 %v753, %v785
      %v791 = vmul.f32 %v754, %v785
      %v792 = vmul.f32 %v755, %v785
      %v793 = vmul.f32 %v756, %v785
      %v794 = vmul.f32 %v757, %v785
      %v795 = vmul.f32 %v758, %v785
      %v796 = vmul.f32 %v759, %v785
      %v797 = vmul.f32 %v760, %v785
      %v798 = vmul.f32 %v761, %v785
      %v799 = vmul.f32 %v762, %v785
      %v800 = vmul.f32 %v763, %v785
      %v801 = vmul.f32 %v764, %v785
      %v802 = vmul.f32 %v765, %v785
      %v803 = vmul.f32 %v766, %v785
      %v804 = vmul.f32 %v767, %v785
      %v805 = vmul.f32 %v768, %v785
      %v806 = vmul.f32 %v769, %v785
      %v807 = vmul.f32 %v770, %v785
      %v808 = vmul.f32 %v771, %v785
      %v809 = vmul.f32 %v772, %v785
      %v810 = vmul.f32 %v773, %v785
      %v811 = vmul.f32 %v774, %v785
      %v812 = vmul.f32 %v775, %v785
      %v813 = vmul.f32 %v776, %v785
      %v814 = vmul.f32 %v777, %v785
      %v815 = vmul.f32 %v778, %v785
      %v816 = vmul.f32 %v779, %v785
      %v817 = vmul.f32 %v780, %v785
      %v818 = vadd.f32 %v717, %v786
      %v819 = vadd.f32 %v718, %v787
      %v820 = vadd.f32 %v719, %v788
      %v821 = vadd.f32 %v720, %v789
      %v822 = vadd.f32 %v721, %v790
      %v823 = vadd.f32 %v722, %v791
      %v824 = vadd.f32 %v723, %v792
      %v825 = vadd.f32 %v724, %v793
      %v826 = vadd.f32 %v725, %v794
      %v827 = vadd.f32 %v726, %v795
      %v828 = vadd.f32 %v727, %v796
      %v829 = vadd.f32 %v728, %v797
      %v830 = vadd.f32 %v729, %v798
      %v831 = vadd.f32 %v730, %v799
      %v832 = vadd.f32 %v731, %v800
      %v833 = vadd.f32 %v732, %v801
      %v834 = vadd.f32 %v733, %v802
      %v835 = vadd.f32 %v734, %v803
      %v836 = vadd.f32 %v735, %v804
      %v837 = vadd.f32 %v736, %v805
      %v838 = vadd.f32 %v737, %v806
      %v839 = vadd.f32 %v738, %v807
      %v840 = vadd.f32 %v739, %v808
      %v841 = vadd.f32 %v740, %v809
      %v842 = vadd.f32 %v741, %v810
      %v843 = vadd.f32 %v742, %v811
      %v844 = vadd.f32 %v743, %v812
      %v845 = vadd.f32 %v744, %v813
      %v846 = vadd.f32 %v745, %v814
      %v847 = vadd.f32 %v746, %v815
      %v848 = vadd.f32 %v747, %v816
      %v849 = vadd.f32 %v748, %v817
      %v850 = vld [vmem:[%s311 + $0x2] sm:$0xff]
      %v851 = vld [vmem:[%s311 + $0xa] sm:$0xff]
      %v852 = vld [vmem:[%s311 + $0x1a] sm:$0xff]
      %v853 = vld [vmem:[%s311 + $0x22] sm:$0xff]
      %v854 = vld [vmem:[%s311 + $0x32] sm:$0xff]
      %v855 = vld [vmem:[%s311 + $0x3a] sm:$0xff]
      %v856 = vld [vmem:[%s311 + $0x4a] sm:$0xff]
      %v857 = vld [vmem:[%s311 + $0x52] sm:$0xff]
      %v858 = vld [vmem:[%s311 + $0x62] sm:$0xff]
      %v859 = vld [vmem:[%s311 + $0x6a] sm:$0xff]
      %v860 = vld [vmem:[%s311 + $0x7a] sm:$0xff]
      %v861 = vld [vmem:[%s311 + $0x82] sm:$0xff]
      %v862 = vld [vmem:[%s311 + $0x92] sm:$0xff]
      %v863 = vld [vmem:[%s311 + $0x9a] sm:$0xff]
      %v864 = vld [vmem:[%s311 + $0xaa] sm:$0xff]
      %v865 = vld [vmem:[%s311 + $0xb2] sm:$0xff]
      %v866 = vld [vmem:[%s311 + $0xc2] sm:$0xff]
      %v867 = vld [vmem:[%s311 + $0xca] sm:$0xff]
      %v868 = vld [vmem:[%s311 + $0xda] sm:$0xff]
      %v869 = vld [vmem:[%s311 + $0xe2] sm:$0xff]
      %v870 = vld [vmem:[%s311 + $0xf2] sm:$0xff]
      %v871 = vld [vmem:[%s311 + $0xfa] sm:$0xff]
      %v872 = vld [vmem:[%s311 + $0x10a] sm:$0xff]
      %v873 = vld [vmem:[%s311 + $0x112] sm:$0xff]
      %v874 = vld [vmem:[%s311 + $0x122] sm:$0xff]
      %v875 = vld [vmem:[%s311 + $0x12a] sm:$0xff]
      %v876 = vld [vmem:[%s311 + $0x13a] sm:$0xff]
      %v877 = vld [vmem:[%s311 + $0x142] sm:$0xff]
      %v878 = vld [vmem:[%s311 + $0x152] sm:$0xff]
      %v879 = vld [vmem:[%s311 + $0x15a] sm:$0xff]
      %v880 = vld [vmem:[%s311 + $0x16a] sm:$0xff]
      %v881 = vld [vmem:[%s311 + $0x172] sm:$0xff]
      %v882 = vld [vmem:[%s679 + $0x2] sm:$0x1]
      %v883 = vlaneseq
      %v884 = vshrl.u32 %v883, 7
      %v885 = vsub.s32 0, %v884
      %v886 = vrot.slane %v882, %v885
      %v887 = vmul.f32 %v850, %v886
      %v888 = vmul.f32 %v851, %v886
      %v889 = vmul.f32 %v852, %v886
      %v890 = vmul.f32 %v853, %v886
      %v891 = vmul.f32 %v854, %v886
      %v892 = vmul.f32 %v855, %v886
      %v893 = vmul.f32 %v856, %v886
      %v894 = vmul.f32 %v857, %v886
      %v895 = vmul.f32 %v858, %v886
      %v896 = vmul.f32 %v859, %v886
      %v897 = vmul.f32 %v860, %v886
      %v898 = vmul.f32 %v861, %v886
      %v899 = vmul.f32 %v862, %v886
      %v900 = vmul.f32 %v863, %v886
      %v901 = vmul.f32 %v864, %v886
      %v902 = vmul.f32 %v865, %v886
      %v903 = vmul.f32 %v866, %v886
      %v904 = vmul.f32 %v867, %v886
      %v905 = vmul.f32 %v868, %v886
      %v906 = vmul.f32 %v869, %v886
      %v907 = vmul.f32 %v870, %v886
      %v908 = vmul.f32 %v871, %v886
      %v909 = vmul.f32 %v872, %v886
      %v910 = vmul.f32 %v873, %v886
      %v911 = vmul.f32 %v874, %v886
      %v912 = vmul.f32 %v875, %v886
      %v913 = vmul.f32 %v876, %v886
      %v914 = vmul.f32 %v877, %v886
      %v915 = vmul.f32 %v878, %v886
      %v916 = vmul.f32 %v879, %v886
      %v917 = vmul.f32 %v880, %v886
      %v918 = vmul.f32 %v881, %v886
      %v919 = vadd.f32 %v818, %v887
      %v920 = vadd.f32 %v819, %v888
      %v921 = vadd.f32 %v820, %v889
      %v922 = vadd.f32 %v821, %v890
      %v923 = vadd.f32 %v822, %v891
      %v924 = vadd.f32 %v823, %v892
      %v925 = vadd.f32 %v824, %v893
      %v926 = vadd.f32 %v825, %v894
      %v927 = vadd.f32 %v826, %v895
      %v928 = vadd.f32 %v827, %v896
      %v929 = vadd.f32 %v828, %v897
      %v930 = vadd.f32 %v829, %v898
      %v931 = vadd.f32 %v830, %v899
      %v932 = vadd.f32 %v831, %v900
      %v933 = vadd.f32 %v832, %v901
      %v934 = vadd.f32 %v833, %v902
      %v935 = vadd.f32 %v834, %v903
      %v936 = vadd.f32 %v835, %v904
      %v937 = vadd.f32 %v836, %v905
      %v938 = vadd.f32 %v837, %v906
      %v939 = vadd.f32 %v838, %v907
      %v940 = vadd.f32 %v839, %v908
      %v941 = vadd.f32 %v840, %v909
      %v942 = vadd.f32 %v841, %v910
      %v943 = vadd.f32 %v842, %v911
      %v944 = vadd.f32 %v843, %v912
      %v945 = vadd.f32 %v844, %v913
      %v946 = vadd.f32 %v845, %v914
      %v947 = vadd.f32 %v846, %v915
      %v948 = vadd.f32 %v847, %v916
      %v949 = vadd.f32 %v848, %v917
      %v950 = vadd.f32 %v849, %v918
      %s951 = scalar_lea.vmem [#allocation2], 48
      %v952 = vld [vmem:[%s951] sm:$0xff]
      %v953 = vld [vmem:[%s951 + $0x8] sm:$0xff]
      %v954 = vld [vmem:[%s951 + $0x18] sm:$0xff]
      %v955 = vld [vmem:[%s951 + $0x20] sm:$0xff]
      %v956 = vld [vmem:[%s951 + $0x30] sm:$0xff]
      %v957 = vld [vmem:[%s951 + $0x38] sm:$0xff]
      %v958 = vld [vmem:[%s951 + $0x48] sm:$0xff]
      %v959 = vld [vmem:[%s951 + $0x50] sm:$0xff]
      %v960 = vld [vmem:[%s951 + $0x60] sm:$0xff]
      %v961 = vld [vmem:[%s951 + $0x68] sm:$0xff]
      %v962 = vld [vmem:[%s951 + $0x78] sm:$0xff]
      %v963 = vld [vmem:[%s951 + $0x80] sm:$0xff]
      %v964 = vld [vmem:[%s951 + $0x90] sm:$0xff]
      %v965 = vld [vmem:[%s951 + $0x98] sm:$0xff]
      %v966 = vld [vmem:[%s951 + $0xa8] sm:$0xff]
      %v967 = vld [vmem:[%s951 + $0xb0] sm:$0xff]
      %v968 = vld [vmem:[%s951 + $0xc0] sm:$0xff]
      %v969 = vld [vmem:[%s951 + $0xc8] sm:$0xff]
      %v970 = vld [vmem:[%s951 + $0xd8] sm:$0xff]
      %v971 = vld [vmem:[%s951 + $0xe0] sm:$0xff]
      %v972 = vld [vmem:[%s951 + $0xf0] sm:$0xff]
      %v973 = vld [vmem:[%s951 + $0xf8] sm:$0xff]
      %v974 = vld [vmem:[%s951 + $0x108] sm:$0xff]
      %v975 = vld [vmem:[%s951 + $0x110] sm:$0xff]
      %v976 = vld [vmem:[%s951 + $0x120] sm:$0xff]
      %v977 = vld [vmem:[%s951 + $0x128] sm:$0xff]
      %v978 = vld [vmem:[%s951 + $0x138] sm:$0xff]
      %v979 = vld [vmem:[%s951 + $0x140] sm:$0xff]
      %v980 = vld [vmem:[%s951 + $0x150] sm:$0xff]
      %v981 = vld [vmem:[%s951 + $0x158] sm:$0xff]
      %v982 = vld [vmem:[%s951 + $0x168] sm:$0xff]
      %v983 = vld [vmem:[%s951 + $0x170] sm:$0xff]
      %s984 = scalar_lea.vmem %s221, 8
      %v985 = vld [vmem:[%s984] sm:$0x1]
      %v986 = vlaneseq
      %v987 = vshrl.u32 %v986, 7
      %v988 = vsub.s32 0, %v987
      %v989 = vrot.slane %v985, %v988
      %v990 = vmul.f32 %v952, %v989
      %v991 = vmul.f32 %v953, %v989
      %v992 = vmul.f32 %v954, %v989
      %v993 = vmul.f32 %v955, %v989
      %v994 = vmul.f32 %v956, %v989
      %v995 = vmul.f32 %v957, %v989
      %v996 = vmul.f32 %v958, %v989
      %v997 = vmul.f32 %v959, %v989
      %v998 = vmul.f32 %v960, %v989
      %v999 = vmul.f32 %v961, %v989
      %v1000 = vmul.f32 %v962, %v989
      %v1001 = vmul.f32 %v963, %v989
      %v1002 = vmul.f32 %v964, %v989
      %v1003 = vmul.f32 %v965, %v989
      %v1004 = vmul.f32 %v966, %v989
      %v1005 = vmul.f32 %v967, %v989
      %v1006 = vmul.f32 %v968, %v989
      %v1007 = vmul.f32 %v969, %v989
      %v1008 = vmul.f32 %v970, %v989
      %v1009 = vmul.f32 %v971, %v989
      %v1010 = vmul.f32 %v972, %v989
      %v1011 = vmul.f32 %v973, %v989
      %v1012 = vmul.f32 %v974, %v989
      %v1013 = vmul.f32 %v975, %v989
      %v1014 = vmul.f32 %v976, %v989
      %v1015 = vmul.f32 %v977, %v989
      %v1016 = vmul.f32 %v978, %v989
      %v1017 = vmul.f32 %v979, %v989
      %v1018 = vmul.f32 %v980, %v989
      %v1019 = vmul.f32 %v981, %v989
      %v1020 = vmul.f32 %v982, %v989
      %v1021 = vmul.f32 %v983, %v989
      %v1022 = vadd.f32 %v919, %v990
      %v1023 = vadd.f32 %v920, %v991
      %v1024 = vadd.f32 %v921, %v992
      %v1025 = vadd.f32 %v922, %v993
      %v1026 = vadd.f32 %v923, %v994
      %v1027 = vadd.f32 %v924, %v995
      %v1028 = vadd.f32 %v925, %v996
      %v1029 = vadd.f32 %v926, %v997
      %v1030 = vadd.f32 %v927, %v998
      %v1031 = vadd.f32 %v928, %v999
      %v1032 = vadd.f32 %v929, %v1000
      %v1033 = vadd.f32 %v930, %v1001
      %v1034 = vadd.f32 %v931, %v1002
      %v1035 = vadd.f32 %v932, %v1003
      %v1036 = vadd.f32 %v933, %v1004
      %v1037 = vadd.f32 %v934, %v1005
      %v1038 = vadd.f32 %v935, %v1006
      %v1039 = vadd.f32 %v936, %v1007
      %v1040 = vadd.f32 %v937, %v1008
      %v1041 = vadd.f32 %v938, %v1009
      %v1042 = vadd.f32 %v939, %v1010
      %v1043 = vadd.f32 %v940, %v1011
      %v1044 = vadd.f32 %v941, %v1012
      %v1045 = vadd.f32 %v942, %v1013
      %v1046 = vadd.f32 %v943, %v1014
      %v1047 = vadd.f32 %v944, %v1015
      %v1048 = vadd.f32 %v945, %v1016
      %v1049 = vadd.f32 %v946, %v1017
      %v1050 = vadd.f32 %v947, %v1018
      %v1051 = vadd.f32 %v948, %v1019
      %v1052 = vadd.f32 %v949, %v1020
      %v1053 = vadd.f32 %v950, %v1021
      %v1054 = vld [vmem:[%s951 + $0x1] sm:$0xff]
      %v1055 = vld [vmem:[%s951 + $0x9] sm:$0xff]
      %v1056 = vld [vmem:[%s951 + $0x19] sm:$0xff]
      %v1057 = vld [vmem:[%s951 + $0x21] sm:$0xff]
      %v1058 = vld [vmem:[%s951 + $0x31] sm:$0xff]
      %v1059 = vld [vmem:[%s951 + $0x39] sm:$0xff]
      %v1060 = vld [vmem:[%s951 + $0x49] sm:$0xff]
      %v1061 = vld [vmem:[%s951 + $0x51] sm:$0xff]
      %v1062 = vld [vmem:[%s951 + $0x61] sm:$0xff]
      %v1063 = vld [vmem:[%s951 + $0x69] sm:$0xff]
      %v1064 = vld [vmem:[%s951 + $0x79] sm:$0xff]
      %v1065 = vld [vmem:[%s951 + $0x81] sm:$0xff]
      %v1066 = vld [vmem:[%s951 + $0x91] sm:$0xff]
      %v1067 = vld [vmem:[%s951 + $0x99] sm:$0xff]
      %v1068 = vld [vmem:[%s951 + $0xa9] sm:$0xff]
      %v1069 = vld [vmem:[%s951 + $0xb1] sm:$0xff]
      %v1070 = vld [vmem:[%s951 + $0xc1] sm:$0xff]
      %v1071 = vld [vmem:[%s951 + $0xc9] sm:$0xff]
      %v1072 = vld [vmem:[%s951 + $0xd9] sm:$0xff]
      %v1073 = vld [vmem:[%s951 + $0xe1] sm:$0xff]
      %v1074 = vld [vmem:[%s951 + $0xf1] sm:$0xff]
      %v1075 = vld [vmem:[%s951 + $0xf9] sm:$0xff]
      %v1076 = vld [vmem:[%s951 + $0x109] sm:$0xff]
      %v1077 = vld [vmem:[%s951 + $0x111] sm:$0xff]
      %v1078 = vld [vmem:[%s951 + $0x121] sm:$0xff]
      %v1079 = vld [vmem:[%s951 + $0x129] sm:$0xff]
      %v1080 = vld [vmem:[%s951 + $0x139] sm:$0xff]
      %v1081 = vld [vmem:[%s951 + $0x141] sm:$0xff]
      %v1082 = vld [vmem:[%s951 + $0x151] sm:$0xff]
      %v1083 = vld [vmem:[%s951 + $0x159] sm:$0xff]
      %v1084 = vld [vmem:[%s951 + $0x169] sm:$0xff]
      %v1085 = vld [vmem:[%s951 + $0x171] sm:$0xff]
      %v1086 = vld [vmem:[%s984 + $0x1] sm:$0x1]
      %v1087 = vlaneseq
      %v1088 = vshrl.u32 %v1087, 7
      %v1089 = vsub.s32 0, %v1088
      %v1090 = vrot.slane %v1086, %v1089
      %v1091 = vmul.f32 %v1054, %v1090
      %v1092 = vmul.f32 %v1055, %v1090
      %v1093 = vmul.f32 %v1056, %v1090
      %v1094 = vmul.f32 %v1057, %v1090
      %v1095 = vmul.f32 %v1058, %v1090
      %v1096 = vmul.f32 %v1059, %v1090
      %v1097 = vmul.f32 %v1060, %v1090
      %v1098 = vmul.f32 %v1061, %v1090
      %v1099 = vmul.f32 %v1062, %v1090
      %v1100 = vmul.f32 %v1063, %v1090
      %v1101 = vmul.f32 %v1064, %v1090
      %v1102 = vmul.f32 %v1065, %v1090
      %v1103 = vmul.f32 %v1066, %v1090
      %v1104 = vmul.f32 %v1067, %v1090
      %v1105 = vmul.f32 %v1068, %v1090
      %v1106 = vmul.f32 %v1069, %v1090
      %v1107 = vmul.f32 %v1070, %v1090
      %v1108 = vmul.f32 %v1071, %v1090
      %v1109 = vmul.f32 %v1072, %v1090
      %v1110 = vmul.f32 %v1073, %v1090
      %v1111 = vmul.f32 %v1074, %v1090
      %v1112 = vmul.f32 %v1075, %v1090
      %v1113 = vmul.f32 %v1076, %v1090
      %v1114 = vmul.f32 %v1077, %v1090
      %v1115 = vmul.f32 %v1078, %v1090
      %v1116 = vmul.f32 %v1079, %v1090
      %v1117 = vmul.f32 %v1080, %v1090
      %v1118 = vmul.f32 %v1081, %v1090
      %v1119 = vmul.f32 %v1082, %v1090
      %v1120 = vmul.f32 %v1083, %v1090
      %v1121 = vmul.f32 %v1084, %v1090
      %v1122 = vmul.f32 %v1085, %v1090
      %v1123 = vadd.f32 %v1022, %v1091
      %v1124 = vadd.f32 %v1023, %v1092
      %v1125 = vadd.f32 %v1024, %v1093
      %v1126 = vadd.f32 %v1025, %v1094
      %v1127 = vadd.f32 %v1026, %v1095
      %v1128 = vadd.f32 %v1027, %v1096
      %v1129 = vadd.f32 %v1028, %v1097
      %v1130 = vadd.f32 %v1029, %v1098
      %v1131 = vadd.f32 %v1030, %v1099
      %v1132 = vadd.f32 %v1031, %v1100
      %v1133 = vadd.f32 %v1032, %v1101
      %v1134 = vadd.f32 %v1033, %v1102
      %v1135 = vadd.f32 %v1034, %v1103
      %v1136 = vadd.f32 %v1035, %v1104
      %v1137 = vadd.f32 %v1036, %v1105
      %v1138 = vadd.f32 %v1037, %v1106
      %v1139 = vadd.f32 %v1038, %v1107
      %v1140 = vadd.f32 %v1039, %v1108
      %v1141 = vadd.f32 %v1040, %v1109
      %v1142 = vadd.f32 %v1041, %v1110
      %v1143 = vadd.f32 %v1042, %v1111
      %v1144 = vadd.f32 %v1043, %v1112
      %v1145 = vadd.f32 %v1044, %v1113
      %v1146 = vadd.f32 %v1045, %v1114
      %v1147 = vadd.f32 %v1046, %v1115
      %v1148 = vadd.f32 %v1047, %v1116
      %v1149 = vadd.f32 %v1048, %v1117
      %v1150 = vadd.f32 %v1049, %v1118
      %v1151 = vadd.f32 %v1050, %v1119
      %v1152 = vadd.f32 %v1051, %v1120
      %v1153 = vadd.f32 %v1052, %v1121
      %v1154 = vadd.f32 %v1053, %v1122
      %v1155 = vld [vmem:[%s951 + $0x2] sm:$0xff]
      %v1156 = vld [vmem:[%s951 + $0xa] sm:$0xff]
      %v1157 = vld [vmem:[%s951 + $0x1a] sm:$0xff]
      %v1158 = vld [vmem:[%s951 + $0x22] sm:$0xff]
      %v1159 = vld [vmem:[%s951 + $0x32] sm:$0xff]
      %v1160 = vld [vmem:[%s951 + $0x3a] sm:$0xff]
      %v1161 = vld [vmem:[%s951 + $0x4a] sm:$0xff]
      %v1162 = vld [vmem:[%s951 + $0x52] sm:$0xff]
      %v1163 = vld [vmem:[%s951 + $0x62] sm:$0xff]
      %v1164 = vld [vmem:[%s951 + $0x6a] sm:$0xff]
      %v1165 = vld [vmem:[%s951 + $0x7a] sm:$0xff]
      %v1166 = vld [vmem:[%s951 + $0x82] sm:$0xff]
      %v1167 = vld [vmem:[%s951 + $0x92] sm:$0xff]
      %v1168 = vld [vmem:[%s951 + $0x9a] sm:$0xff]
      %v1169 = vld [vmem:[%s951 + $0xaa] sm:$0xff]
      %v1170 = vld [vmem:[%s951 + $0xb2] sm:$0xff]
      %v1171 = vld [vmem:[%s951 + $0xc2] sm:$0xff]
      %v1172 = vld [vmem:[%s951 + $0xca] sm:$0xff]
      %v1173 = vld [vmem:[%s951 + $0xda] sm:$0xff]
      %v1174 = vld [vmem:[%s951 + $0xe2] sm:$0xff]
      %v1175 = vld [vmem:[%s951 + $0xf2] sm:$0xff]
      %v1176 = vld [vmem:[%s951 + $0xfa] sm:$0xff]
      %v1177 = vld [vmem:[%s951 + $0x10a] sm:$0xff]
      %v1178 = vld [vmem:[%s951 + $0x112] sm:$0xff]
      %v1179 = vld [vmem:[%s951 + $0x122] sm:$0xff]
      %v1180 = vld [vmem:[%s951 + $0x12a] sm:$0xff]
      %v1181 = vld [vmem:[%s951 + $0x13a] sm:$0xff]
      %v1182 = vld [vmem:[%s951 + $0x142] sm:$0xff]
      %v1183 = vld [vmem:[%s951 + $0x152] sm:$0xff]
      %v1184 = vld [vmem:[%s951 + $0x15a] sm:$0xff]
      %v1185 = vld [vmem:[%s951 + $0x16a] sm:$0xff]
      %v1186 = vld [vmem:[%s951 + $0x172] sm:$0xff]
      %v1187 = vld [vmem:[%s984 + $0x2] sm:$0x1]
      %v1188 = vlaneseq
      %v1189 = vshrl.u32 %v1188, 7
      %v1190 = vsub.s32 0, %v1189
      %v1191 = vrot.slane %v1187, %v1190
      %v1192 = vmul.f32 %v1155, %v1191
      %v1193 = vmul.f32 %v1156, %v1191
      %v1194 = vmul.f32 %v1157, %v1191
      %v1195 = vmul.f32 %v1158, %v1191
      %v1196 = vmul.f32 %v1159, %v1191
      %v1197 = vmul.f32 %v1160, %v1191
      %v1198 = vmul.f32 %v1161, %v1191
      %v1199 = vmul.f32 %v1162, %v1191
      %v1200 = vmul.f32 %v1163, %v1191
      %v1201 = vmul.f32 %v1164, %v1191
      %v1202 = vmul.f32 %v1165, %v1191
      %v1203 = vmul.f32 %v1166, %v1191
      %v1204 = vmul.f32 %v1167, %v1191
      %v1205 = vmul.f32 %v1168, %v1191
      %v1206 = vmul.f32 %v1169, %v1191
      %v1207 = vmul.f32 %v1170, %v1191
      %v1208 = vmul.f32 %v1171, %v1191
      %v1209 = vmul.f32 %v1172, %v1191
      %v1210 = vmul.f32 %v1173, %v1191
      %v1211 = vmul.f32 %v1174, %v1191
      %v1212 = vmul.f32 %v1175, %v1191
      %v1213 = vmul.f32 %v1176, %v1191
      %v1214 = vmul.f32 %v1177, %v1191
      %v1215 = vmul.f32 %v1178, %v1191
      %v1216 = vmul.f32 %v1179, %v1191
      %v1217 = vmul.f32 %v1180, %v1191
      %v1218 = vmul.f32 %v1181, %v1191
      %v1219 = vmul.f32 %v1182, %v1191
      %v1220 = vmul.f32 %v1183, %v1191
      %v1221 = vmul.f32 %v1184, %v1191
      %v1222 = vmul.f32 %v1185, %v1191
      %v1223 = vmul.f32 %v1186, %v1191
      %v1224 = vadd.f32 %v1123, %v1192
      %v1225 = vadd.f32 %v1124, %v1193
      %v1226 = vadd.f32 %v1125, %v1194
      %v1227 = vadd.f32 %v1126, %v1195
      %v1228 = vadd.f32 %v1127, %v1196
      %v1229 = vadd.f32 %v1128, %v1197
      %v1230 = vadd.f32 %v1129, %v1198
      %v1231 = vadd.f32 %v1130, %v1199
      %v1232 = vadd.f32 %v1131, %v1200
      %v1233 = vadd.f32 %v1132, %v1201
      %v1234 = vadd.f32 %v1133, %v1202
      %v1235 = vadd.f32 %v1134, %v1203
      %v1236 = vadd.f32 %v1135, %v1204
      %v1237 = vadd.f32 %v1136, %v1205
      %v1238 = vadd.f32 %v1137, %v1206
      %v1239 = vadd.f32 %v1138, %v1207
      %v1240 = vadd.f32 %v1139, %v1208
      %v1241 = vadd.f32 %v1140, %v1209
      %v1242 = vadd.f32 %v1141, %v1210
      %v1243 = vadd.f32 %v1142, %v1211
      %v1244 = vadd.f32 %v1143, %v1212
      %v1245 = vadd.f32 %v1144, %v1213
      %v1246 = vadd.f32 %v1145, %v1214
      %v1247 = vadd.f32 %v1146, %v1215
      %v1248 = vadd.f32 %v1147, %v1216
      %v1249 = vadd.f32 %v1148, %v1217
      %v1250 = vadd.f32 %v1149, %v1218
      %v1251 = vadd.f32 %v1150, %v1219
      %v1252 = vadd.f32 %v1151, %v1220
      %v1253 = vadd.f32 %v1152, %v1221
      %v1254 = vadd.f32 %v1153, %v1222
      %v1255 = vadd.f32 %v1154, %v1223
      %v1256 = vld [vmem:[%s224] sm:$0x1]
      %v1258 = vlaneseq
      %v1259 = vshrl.u32 %v1258, 7
      %v1260 = vsub.s32 0, %v1259
      %v1261 = vrot.slane %v1256, %v1260
      %v1263 = vadd.f32 %v1224, %v1261
      %v1264 = vadd.f32 %v1225, %v1261
      %v1265 = vadd.f32 %v1226, %v1261
      %v1266 = vadd.f32 %v1227, %v1261
      %v1267 = vadd.f32 %v1228, %v1261
      %v1268 = vadd.f32 %v1229, %v1261
      %v1269 = vadd.f32 %v1230, %v1261
      %v1270 = vadd.f32 %v1231, %v1261
      %v1271 = vadd.f32 %v1232, %v1261
      %v1272 = vadd.f32 %v1233, %v1261
      %v1273 = vadd.f32 %v1234, %v1261
      %v1274 = vadd.f32 %v1235, %v1261
      %v1275 = vadd.f32 %v1236, %v1261
      %v1276 = vadd.f32 %v1237, %v1261
      %v1277 = vadd.f32 %v1238, %v1261
      %v1278 = vadd.f32 %v1239, %v1261
      %v1279 = vadd.f32 %v1240, %v1261
      %v1280 = vadd.f32 %v1241, %v1261
      %v1281 = vadd.f32 %v1242, %v1261
      %v1282 = vadd.f32 %v1243, %v1261
      %v1283 = vadd.f32 %v1244, %v1261
      %v1284 = vadd.f32 %v1245, %v1261
      %v1285 = vadd.f32 %v1246, %v1261
      %v1286 = vadd.f32 %v1247, %v1261
      %v1287 = vadd.f32 %v1248, %v1261
      %v1288 = vadd.f32 %v1249, %v1261
      %v1289 = vadd.f32 %v1250, %v1261
      %v1290 = vadd.f32 %v1251, %v1261
      %v1291 = vadd.f32 %v1252, %v1261
      %v1292 = vadd.f32 %v1253, %v1261
      %v1293 = vadd.f32 %v1254, %v1261
      %v1294 = vadd.f32 %v1255, %v1261
      %v1295 = vmax.f32 %v1263, 0.0
      %v1296 = vmax.f32 %v1264, 0.0
      %v1297 = vmax.f32 %v1265, 0.0
      %v1298 = vmax.f32 %v1266, 0.0
      %v1299 = vmax.f32 %v1267, 0.0
      %v1300 = vmax.f32 %v1268, 0.0
      %v1301 = vmax.f32 %v1269, 0.0
      %v1302 = vmax.f32 %v1270, 0.0
      %v1303 = vmax.f32 %v1271, 0.0
      %v1304 = vmax.f32 %v1272, 0.0
      %v1305 = vmax.f32 %v1273, 0.0
      %v1306 = vmax.f32 %v1274, 0.0
      %v1307 = vmax.f32 %v1275, 0.0
      %v1308 = vmax.f32 %v1276, 0.0
      %v1309 = vmax.f32 %v1277, 0.0
      %v1310 = vmax.f32 %v1278, 0.0
      %v1311 = vmax.f32 %v1279, 0.0
      %v1312 = vmax.f32 %v1280, 0.0
      %v1313 = vmax.f32 %v1281, 0.0
      %v1314 = vmax.f32 %v1282, 0.0
      %v1315 = vmax.f32 %v1283, 0.0
      %v1316 = vmax.f32 %v1284, 0.0
      %v1317 = vmax.f32 %v1285, 0.0
      %v1318 = vmax.f32 %v1286, 0.0
      %v1319 = vmax.f32 %v1287, 0.0
      %v1320 = vmax.f32 %v1288, 0.0
      %v1321 = vmax.f32 %v1289, 0.0
      %v1322 = vmax.f32 %v1290, 0.0
      %v1323 = vmax.f32 %v1291, 0.0
      %v1324 = vmax.f32 %v1292, 0.0
      %v1325 = vmax.f32 %v1293, 0.0
      %v1326 = vmax.f32 %v1294, 0.0
      %1327 = vst.msk [vmem:[%s232] sm:$0xff] %vm233, %v1295
      %1328 = vst.msk [vmem:[%s232 + $0x8] sm:$0xff] %vm233, %v1296
      %1329 = vst.msk [vmem:[%s232 + $0x10] sm:$0xff] %vm233, %v1297
      %1330 = vst.msk [vmem:[%s232 + $0x18] sm:$0xff] %vm233, %v1298
      %1331 = vst.msk [vmem:[%s232 + $0x20] sm:$0xff] %vm233, %v1299
      %1332 = vst.msk [vmem:[%s232 + $0x28] sm:$0xff] %vm233, %v1300
      %1333 = vst.msk [vmem:[%s232 + $0x30] sm:$0xff] %vm233, %v1301
      %1334 = vst.msk [vmem:[%s232 + $0x38] sm:$0xff] %vm233, %v1302
      %1335 = vst.msk [vmem:[%s232 + $0x40] sm:$0xff] %vm233, %v1303
      %1336 = vst.msk [vmem:[%s232 + $0x48] sm:$0xff] %vm233, %v1304
      %1337 = vst.msk [vmem:[%s232 + $0x50] sm:$0xff] %vm233, %v1305
      %1338 = vst.msk [vmem:[%s232 + $0x58] sm:$0xff] %vm233, %v1306
      %1339 = vst.msk [vmem:[%s232 + $0x60] sm:$0xff] %vm233, %v1307
      %1340 = vst.msk [vmem:[%s232 + $0x68] sm:$0xff] %vm233, %v1308
      %1341 = vst.msk [vmem:[%s232 + $0x70] sm:$0xff] %vm233, %v1309
      %1342 = vst.msk [vmem:[%s232 + $0x78] sm:$0xff] %vm233, %v1310
      %1343 = vst.msk [vmem:[%s232 + $0x80] sm:$0xff] %vm233, %v1311
      %1344 = vst.msk [vmem:[%s232 + $0x88] sm:$0xff] %vm233, %v1312
      %1345 = vst.msk [vmem:[%s232 + $0x90] sm:$0xff] %vm233, %v1313
      %1346 = vst.msk [vmem:[%s232 + $0x98] sm:$0xff] %vm233, %v1314
      %1347 = vst.msk [vmem:[%s232 + $0xa0] sm:$0xff] %vm233, %v1315
      %1348 = vst.msk [vmem:[%s232 + $0xa8] sm:$0xff] %vm233, %v1316
      %1349 = vst.msk [vmem:[%s232 + $0xb0] sm:$0xff] %vm233, %v1317
      %1350 = vst.msk [vmem:[%s232 + $0xb8] sm:$0xff] %vm233, %v1318
      %1351 = vst.msk [vmem:[%s232 + $0xc0] sm:$0xff] %vm233, %v1319
      %1352 = vst.msk [vmem:[%s232 + $0xc8] sm:$0xff] %vm233, %v1320
      %1353 = vst.msk [vmem:[%s232 + $0xd0] sm:$0xff] %vm233, %v1321
      %1354 = vst.msk [vmem:[%s232 + $0xd8] sm:$0xff] %vm233, %v1322
      %1355 = vst.msk [vmem:[%s232 + $0xe0] sm:$0xff] %vm233, %v1323
      %1356 = vst.msk [vmem:[%s232 + $0xe8] sm:$0xff] %vm233, %v1324
      %1357 = vst.msk [vmem:[%s232 + $0xf0] sm:$0xff] %vm233, %v1325
      %1358 = vst.msk [vmem:[%s232 + $0xf8] sm:$0xff] %vm233, %v1326
      %p1359 = scmp.lt.s32.totalorder %s18, 1
      %s1360 = scalar_select %p1359, %s18, 1
      %p1361 = scmp.lt.s32.totalorder %s19, 0
      %s1362 = scalar_select %p1361, %s19, 0
      %s1363 = smul.addr %s1360, 32
      %s1364 = sadd.s32 %s1362, %s1363
      %s1365 = smul.addr %s1364, 8
      %s1366 = scalar_lea.vmem %s3, %s1365
      // Predicated region
      $region33: #{tpu_custom_call.1} parent=31 // pred_check
        %p1367 = pneg %p126
      $region34: #{tpu_custom_call.1} parent=31 // pred_check_branch
        %1369 = sbr.rel (%p1367) target = $region36
      $region35: #{tpu_custom_call.1} parent=31 // pred_region
        _
      $region36: #{tpu_custom_call.1} parent=31 // pred_fallthru
        _
    $region32: #{tpu_custom_call.1} parent=5 // pred_fallthru
      _
    %p1370 = scmp.le.s32.totalorder 2, %s9
    // Predicated region
    $region37: #{tpu_custom_call.1} parent=5 // pred_check
      %p1371 = pneg %p1370
    $region38: #{tpu_custom_call.1} parent=5 // pred_check_branch
      %1373 = sbr.rel (%p1371) target = $region40
    $region39: #{tpu_custom_call.1} parent=5 // pred_region
      %s1374 = ssub.s32 %s9, 2
      // Predicated region
      $region41: #{tpu_custom_call.1} parent=39 // pred_check
        %p1375 = pneg %p132
      $region42: #{tpu_custom_call.1} parent=39 // pred_check_branch
        %1377 = sbr.rel (%p1375) target = $region44
      $region43: #{tpu_custom_call.1} parent=39 // pred_region
        %p1378 = scmp.lt.s32.totalorder %s20, 1
        %s1379 = scalar_select %p1378, %s20, 1
        %p1380 = scmp.lt.s32.totalorder %s21, 0
        %s1381 = scalar_select %p1380, %s21, 0
        %s1382 = smul.addr %s1379, 32
        %s1383 = sadd.s32 %s1381, %s1382
        %s1384 = smul.addr %s1383, 8
        %s1385 = scalar_lea.vmem %s3, %s1384
      $region44: #{tpu_custom_call.1} parent=39 // pred_fallthru
        _
    $region40: #{tpu_custom_call.1} parent=5 // pred_fallthru
      _
  $region6: #{tpu_custom_call.1} parent=0 // loop_footer
    %s13 = sadd.s32 1, %s9
  $region7: #{tpu_custom_call.1} parent=0 // loop_footer_branch
    %8 = sbr.rel target = $region3
  $region8: #{tpu_custom_call.1} parent=0 // loop_exit
    _

</llo_original>
